<compile_context>
chip_gen: v6e
topology: v6e:2x2x1
jax: 0.10.0
libtpu: 0.0.40
codegen_flags: <defaults>
</compile_context>

<pallas_src>
import functools

import jax
import jax.numpy as jnp
from jax.experimental import pallas as pl
from jax.experimental.pallas import tpu as pltpu

VMEM_LIMIT = 32 * 1024 * 1024  # safe on v5e/v6e/v7x, well above the needs of these tiles


def _round_up(x, m):
    return ((x + m - 1) // m) * m


def _choose_tile(n, cap=512):
    t = 128
    while t * 2 <= min(n, cap):
        t *= 2
    return t


# ----------------------------- Pallas kernels ------------------------------ #

def _embed_kernel(x_ref, w_ref, b_ref, o_ref):
    # y = x @ W + b   (x tile f32 -> bf16, W bf16, f32 accumulation)
    o_ref[...] = (
        jnp.dot(x_ref[...].astype(jnp.bfloat16), w_ref[...],
                preferred_element_type=jnp.float32)
        + b_ref[...]
    )


def _gcn_layer_kernel(adj_ref, hk_ref, hres_ref, w_ref, b_ref, snorm_ref,
                      scale_ref, shift_ref, o_ref, acc_ref):
    # grid = (row tiles, contraction tiles); accumulate Ahat @ h in f32 scratch.
    @pl.when(pl.program_id(1) == 0)
    def _init():
        acc_ref[...] = jnp.zeros_like(acc_ref)

    acc_ref[...] += jnp.dot(adj_ref[...], hk_ref[...].astype(jnp.bfloat16),
                            preferred_element_type=jnp.float32)

    @pl.when(pl.program_id(1) == pl.num_programs(1) - 1)
    def _finalize():
        # GraphConv weight + bias
        z = jnp.dot(acc_ref[...].astype(jnp.bfloat16), w_ref[...],
                    preferred_element_type=jnp.float32) + b_ref[...]
        # graph norm (per-node)
        z = z * snorm_ref[...]
        # folded eval-mode batch norm: z * scale + shift
        z = z * scale_ref[...] + shift_ref[...]
        # activation + residual (in_dim == out_dim)
        z = jnp.maximum(z, 0.0)
        o_ref[...] = hres_ref[...] + z


def _edge_pre_kernel(h_ref, ws_ref, wd_ref, ys_ref, yd_ref):
    # per-node halves of the first MLPReadout layer:
    # concat(h_src, h_dst) @ W0 == h_src @ W0_src + h_dst @ W0_dst
    hb = h_ref[...].astype(jnp.bfloat16)
    ys_ref[...] = jnp.dot(hb, ws_ref[...], preferred_element_type=jnp.float32)
    yd_ref[...] = jnp.dot(hb, wd_ref[...], preferred_element_type=jnp.float32)


def _edge_tail_kernel(y_ref, b0_ref, w1_ref, b1_ref, w2_ref, b2_ref, o_ref):
    # y already holds y_src[src] + y_dst[dst]; finish: +b0, relu, FC1, relu, FC2
    y = jnp.maximum(y_ref[...] + b0_ref[...], 0.0)
    y = jnp.dot(y.astype(jnp.bfloat16), w1_ref[...],
                preferred_element_type=jnp.float32) + b1_ref[...]
    y = jnp.maximum(y, 0.0)
    o_ref[...] = jnp.dot(y.astype(jnp.bfloat16), w2_ref[...],
                         preferred_element_type=jnp.float32) + b2_ref[...]


# ----------------------------- Pallas wrappers ------------------------------ #

def pallas_embed(x, w, b, tile_n):
    n_pad = x.shape[0]
    in_pad, d_pad = w.shape
    return pl.pallas_call(
        _embed_kernel,
        out_shape=jax.ShapeDtypeStruct((n_pad, d_pad), jnp.float32),
        grid_spec=pltpu.PrefetchScalarGridSpec(
            num_scalar_prefetch=0,
            grid=(n_pad // tile_n,),
            in_specs=[
                pl.BlockSpec((tile_n, in_pad), lambda i: (i, 0)),
                pl.BlockSpec((in_pad, d_pad), lambda i: (0, 0)),
                pl.BlockSpec((1, d_pad), lambda i: (0, 0)),
            ],
            out_specs=pl.BlockSpec((tile_n, d_pad), lambda i: (i, 0)),
        ),
        compiler_params=pltpu.CompilerParams(
            dimension_semantics=("parallel",),
            vmem_limit_bytes=VMEM_LIMIT),
    )(x, w, b)


def pallas_gcn_layer(adj, h, w, b, snorm, scale, shift, tile_m, tile_k):
    n_pad, d_pad = h.shape
    grid = (n_pad // tile_m, n_pad // tile_k)
    return pl.pallas_call(
        _gcn_layer_kernel,
        out_shape=jax.ShapeDtypeStruct((n_pad, d_pad), jnp.float32),
        grid_spec=pltpu.PrefetchScalarGridSpec(
            num_scalar_prefetch=0,
            grid=grid,
            in_specs=[
                pl.BlockSpec((tile_m, tile_k), lambda i, k: (i, k)),   # Ahat tile (bf16)
                pl.BlockSpec((tile_k, d_pad), lambda i, k: (k, 0)),    # h (contraction)
                pl.BlockSpec((tile_m, d_pad), lambda i, k: (i, 0)),    # h (residual rows)
                pl.BlockSpec((d_pad, d_pad), lambda i, k: (0, 0)),     # W (bf16)
                pl.BlockSpec((1, d_pad), lambda i, k: (0, 0)),         # bias
                pl.BlockSpec((tile_m, 1), lambda i, k: (i, 0)),        # snorm_n
                pl.BlockSpec((1, d_pad), lambda i, k: (0, 0)),         # BN scale
                pl.BlockSpec((1, d_pad), lambda i, k: (0, 0)),         # BN shift
            ],
            out_specs=pl.BlockSpec((tile_m, d_pad), lambda i, k: (i, 0)),
            scratch_shapes=[pltpu.VMEM((tile_m, d_pad), jnp.float32)],
        ),
        compiler_params=pltpu.CompilerParams(
            dimension_semantics=("parallel", "arbitrary"),
            vmem_limit_bytes=VMEM_LIMIT),
    )(adj, h, h, w, b, snorm, scale, shift)


def pallas_edge_pre(h, w0s, w0d, tile_n):
    n_pad, d_pad = h.shape
    return pl.pallas_call(
        _edge_pre_kernel,
        out_shape=(jax.ShapeDtypeStruct((n_pad, d_pad), jnp.float32),
                   jax.ShapeDtypeStruct((n_pad, d_pad), jnp.float32)),
        grid_spec=pltpu.PrefetchScalarGridSpec(
            num_scalar_prefetch=0,
            grid=(n_pad // tile_n,),
            in_specs=[
                pl.BlockSpec((tile_n, d_pad), lambda i: (i, 0)),
                pl.BlockSpec((d_pad, d_pad), lambda i: (0, 0)),
                pl.BlockSpec((d_pad, d_pad), lambda i: (0, 0)),
            ],
            out_specs=[pl.BlockSpec((tile_n, d_pad), lambda i: (i, 0)),
                       pl.BlockSpec((tile_n, d_pad), lambda i: (i, 0))],
        ),
        compiler_params=pltpu.CompilerParams(
            dimension_semantics=("parallel",),
            vmem_limit_bytes=VMEM_LIMIT),
    )(h, w0s, w0d)


def pallas_edge_tail(y, b0, w1, b1, w2, b2, tile_e):
    e_pad, d_pad = y.shape
    d2_pad = w1.shape[1]
    c_pad = w2.shape[1]
    return pl.pallas_call(
        _edge_tail_kernel,
        out_shape=jax.ShapeDtypeStruct((e_pad, c_pad), jnp.float32),
        grid_spec=pltpu.PrefetchScalarGridSpec(
            num_scalar_prefetch=0,
            grid=(e_pad // tile_e,),
            in_specs=[
                pl.BlockSpec((tile_e, d_pad), lambda i: (i, 0)),
                pl.BlockSpec((1, d_pad), lambda i: (0, 0)),
                pl.BlockSpec((d_pad, d2_pad), lambda i: (0, 0)),
                pl.BlockSpec((1, d2_pad), lambda i: (0, 0)),
                pl.BlockSpec((d2_pad, c_pad), lambda i: (0, 0)),
                pl.BlockSpec((1, c_pad), lambda i: (0, 0)),
            ],
            out_specs=pl.BlockSpec((tile_e, c_pad), lambda i: (i, 0)),
        ),
        compiler_params=pltpu.CompilerParams(
            dimension_semantics=("parallel",),
            vmem_limit_bytes=VMEM_LIMIT),
    )(y, b0, w1, b1, w2, b2)


# ------------------------------ model forward ------------------------------ #

def gcn_net_forward(params, adj_bf16, x, snorm_n, src, dst, *,
                    n_edges, n_classes, tile_n, tile_e):
    # node embedding (in_feat_dropout: identity in eval)
    h = pallas_embed(x, params["emb_w"], params["emb_b"], tile_n)
    # GCN layers (fused conv + graph-norm + folded-BN + relu + residual)
    for layer in params["gcn_layers"]:
        h = pallas_gcn_layer(adj_bf16, h, layer["w"], layer["b"], snorm_n,
                             layer["scale"], layer["shift"], tile_n, tile_n)
    # edge readout: per-node halves of FC0, then gather-add (glue), then MLP tail
    mlp = params["mlp"]
    y_src, y_dst = pallas_edge_pre(h, mlp["w0_src"], mlp["w0_dst"], tile_n)
    y_e = jnp.take(y_src, src, axis=0) + jnp.take(y_dst, dst, axis=0)
    logits = pallas_edge_tail(y_e, mlp["b0"], mlp["w1"], mlp["b1"],
                              mlp["w2"], mlp["b2"], tile_e)
    return logits[:n_edges, :n_classes]


# ------------------------------ param helpers ------------------------------ #

def _torch_linear_init(key, fan_in, fan_out):
    # mimic nn.Linear default init: U(-1/sqrt(fan_in), 1/sqrt(fan_in))
    kw, kb = jax.random.split(key)
    bound = 1.0 / jnp.sqrt(float(fan_in))
    w = jax.random.uniform(kw, (fan_in, fan_out), jnp.float32, -bound, bound)
    b = jax.random.uniform(kb, (1, fan_out), jnp.float32, -bound, bound)
    return w, b


def make_params(key, in_dim, hidden_dim, out_dim, n_classes, n_layers):
    keys = jax.random.split(key, 2 + n_layers)
    emb_w, emb_b = _torch_linear_init(keys[0], in_dim, hidden_dim)

    gcn_layers = []
    dims = [hidden_dim] * (n_layers - 1) + [out_dim]
    prev = hidden_dim
    for i, d in enumerate(dims):
        w, b = _torch_linear_init(keys[1 + i], prev, d)
        gcn_layers.append(dict(
            w=w, b=b,
            bn_gamma=jnp.ones((1, d), jnp.float32),
            bn_beta=jnp.zeros((1, d), jnp.float32),
            bn_mean=jnp.zeros((1, d), jnp.float32),
            bn_var=jnp.ones((1, d), jnp.float32),
        ))
        prev = d

    # MLPReadout(2*out_dim, n_classes, L=2): 2D -> D -> D/2 -> C
    kmlp = jax.random.split(keys[1 + n_layers], 3)
    w0, b0 = _torch_linear_init(kmlp[0], 2 * out_dim, out_dim)
    w1, b1 = _torch_linear_init(kmlp[1], out_dim, out_dim // 2)
    w2, b2 = _torch_linear_init(kmlp[2], out_dim // 2, n_classes)
    mlp = dict(w0=w0, b0=b0, w1=w1, b1=b1, w2=w2, b2=b2)

    return dict(emb_w=emb_w, emb_b=emb_b, gcn_layers=gcn_layers, mlp=mlp)


def fold_and_pad_params(params, in_pad, d_pad, d2_pad, c_pad):
    """Fold eval-mode BN into (scale, shift), split W0, pad to lane-dense shapes, cast matmul weights to bf16."""
    def pad2(a, rows, cols):
        return jnp.pad(a, ((0, rows - a.shape[0]), (0, cols - a.shape[1])))

    out = dict(
        emb_w=pad2(params["emb_w"], in_pad, d_pad).astype(jnp.bfloat16),
        emb_b=pad2(params["emb_b"], 1, d_pad),
    )

    layers = []
    for lp in params["gcn_layers"]:
        inv_std = jax.lax.rsqrt(lp["bn_var"] + 1e-5)
        scale = lp["bn_gamma"] * inv_std
        shift = lp["bn_beta"] - lp["bn_mean"] * scale
        layers.append(dict(
            w=pad2(lp["w"], d_pad, d_pad).astype(jnp.bfloat16),
            b=pad2(lp["b"], 1, d_pad),
            scale=pad2(scale, 1, d_pad),
            shift=pad2(shift, 1, d_pad),
        ))
    out["gcn_layers"] = layers

    mlp = params["mlp"]
    d = mlp["w0"].shape[0] // 2
    out["mlp"] = dict(
        w0_src=pad2(mlp["w0"][:d], d_pad, d_pad).astype(jnp.bfloat16),
        w0_dst=pad2(mlp["w0"][d:], d_pad, d_pad).astype(jnp.bfloat16),
        b0=pad2(mlp["b0"], 1, d_pad),
        w1=pad2(mlp["w1"], d_pad, d2_pad).astype(jnp.bfloat16),
        b1=pad2(mlp["b1"], 1, d2_pad),
        w2=pad2(mlp["w2"], d2_pad, c_pad).astype(jnp.bfloat16),
        b2=pad2(mlp["b2"], 1, c_pad),
    )
    return out


def make_graph(n_nodes):
    # simple bidirectional ring graph (no isolated nodes)
    src = jnp.concatenate([jnp.arange(n_nodes), (jnp.arange(n_nodes) + 1) % n_nodes])
    dst = jnp.concatenate([(jnp.arange(n_nodes) + 1) % n_nodes, jnp.arange(n_nodes)])
    adj = jnp.zeros((n_nodes, n_nodes), jnp.float32).at[dst, src].set(1.0)
    deg = jnp.sum(adj, axis=1)
    d_inv_sqrt = 1.0 / jnp.sqrt(jnp.maximum(deg, 1.0))
    # Ahat = D^{-1/2} A D^{-1/2}
    adj_hat = adj * d_inv_sqrt[:, None] * d_inv_sqrt[None, :]
    return adj_hat, src, dst


# ----------------------------------- main ----------------------------------- #

if __name__ == "__main__":
    # small net_params: in_dim=8, hidden=32, out=32, n_classes=2, L=2
    IN_DIM, HIDDEN, OUT, N_CLASSES, N_LAYERS = 8, 32, 32, 2, 2
    N_NODES = 16

    key = jax.random.PRNGKey(0)
    k_param, k_feat = jax.random.split(key)

    # padded (lane-dense) sizes
    IN_PAD = _round_up(IN_DIM, 128)
    D_PAD = _round_up(max(HIDDEN, OUT), 128)
    D2_PAD = _round_up(OUT // 2, 128)
    C_PAD = _round_up(N_CLASSES, 128)

    TILE_N = _choose_tile(N_NODES)
    N_PAD = _round_up(N_NODES, TILE_N)

    params = make_params(k_param, IN_DIM, HIDDEN, OUT, N_CLASSES, N_LAYERS)
    dev_params = fold_and_pad_params(params, IN_PAD, D_PAD, D2_PAD, C_PAD)

    adj_hat, src, dst = make_graph(N_NODES)
    n_edges = int(src.shape[0])
    TILE_E = _choose_tile(n_edges)
    E_PAD = _round_up(n_edges, TILE_E)

    # padded device inputs
    adj_bf16 = jnp.pad(adj_hat, ((0, N_PAD - N_NODES), (0, N_PAD - N_NODES))).astype(jnp.bfloat16)
    x = jax.random.normal(k_feat, (N_NODES, IN_DIM), jnp.float32)
    x_pad = jnp.pad(x, ((0, N_PAD - N_NODES), (0, IN_PAD - IN_DIM)))
    snorm_n = jnp.full((N_NODES, 1), 1.0 / jnp.sqrt(float(N_NODES)), jnp.float32)
    snorm_pad = jnp.pad(snorm_n, ((0, N_PAD - N_NODES), (0, 0)))
    src_pad = jnp.pad(src, (0, E_PAD - n_edges))
    dst_pad = jnp.pad(dst, (0, E_PAD - n_edges))

    fwd = jax.jit(functools.partial(
        gcn_net_forward, dev_params,
        n_edges=n_edges, n_classes=N_CLASSES, tile_n=TILE_N, tile_e=TILE_E))

    edge_logits = fwd(adj_bf16, x_pad, snorm_pad, src_pad, dst_pad)
    jax.block_until_ready(edge_logits)

    assert edge_logits.shape == (2 * N_NODES, N_CLASSES)
    assert jnp.all(jnp.isfinite(edge_logits))
    print("KERNEL_OK")
</pallas_src>

<mosaic_0001>
module attributes {stable_mosaic.version = 11 : i64} {
  func.func @_embed_kernel(%arg0: i32, %arg1: memref<128x128xf32, #tpu.memory_space<vmem>>, %arg2: memref<128x128xbf16, #tpu.memory_space<vmem>>, %arg3: memref<1x128xf32, #tpu.memory_space<vmem>>, %arg4: memref<128x128xf32, #tpu.memory_space<vmem>>) attributes {dimension_semantics = [#tpu.dimension_semantics<parallel>], iteration_bounds = array<i64: 1>, scalar_prefetch = 0 : i64, scratch_operands = 0 : i64, tpu.core_type = #tpu.core_type<tc>, window_params = [{transform_indices = @transform_0, window_bounds = array<i64: 128, 128>}, {pipeline_mode = #tpu.pipeline_mode<synchronous>, transform_indices = @transform_1, window_bounds = array<i64: 128, 128>}, {pipeline_mode = #tpu.pipeline_mode<synchronous>, transform_indices = @transform_2, window_bounds = array<i64: 1, 128>}, {transform_indices = @transform_3, window_bounds = array<i64: 128, 128>}]} {
    %c0 = arith.constant 0 : index
    %c0_0 = arith.constant 0 : index
    %0 = vector.load %arg1[%c0, %c0_0] : memref<128x128xf32, #tpu.memory_space<vmem>>, vector<128x128xf32>
    %1 = arith.truncf %0 : vector<128x128xf32> to vector<128x128xbf16>
    %c0_1 = arith.constant 0 : index
    %c0_2 = arith.constant 0 : index
    %2 = vector.load %arg2[%c0_1, %c0_2] : memref<128x128xbf16, #tpu.memory_space<vmem>>, vector<128x128xbf16>
    %cst = arith.constant dense<0.000000e+00> : vector<128x128xf32>
    %3 = tpu.matmul %1, %2, %cst {dimension_numbers = #tpu.dot_dimension_numbers<[1], [0], [0], [1], [0, 0, 1, 1], [], []>} : vector<128x128xbf16>, vector<128x128xbf16>, vector<128x128xf32> -> vector<128x128xf32>
    %c0_3 = arith.constant 0 : index
    %c0_4 = arith.constant 0 : index
    %4 = vector.load %arg3[%c0_3, %c0_4] : memref<1x128xf32, #tpu.memory_space<vmem>>, vector<1x128xf32>
    %5 = vector.broadcast %4 : vector<1x128xf32> to vector<128x128xf32>
    %6 = arith.addf %3, %5 : vector<128x128xf32>
    %c0_5 = arith.constant 0 : index
    %c0_6 = arith.constant 0 : index
    %7 = vector.load %arg4[%c0_5, %c0_6] : memref<128x128xf32, #tpu.memory_space<vmem>>, vector<128x128xf32>
    tpu.vector_store %arg4[%c0_5, %c0_6], %6 {strides = array<i32>} : memref<128x128xf32, #tpu.memory_space<vmem>>, vector<128x128xf32>,
    return
  }
  func.func @transform_0(%arg0: i32) -> (i32, i32) {
    %c0_i32 = arith.constant 0 : i32
    %c0_i32_0 = arith.constant 0 : i32
    return %arg0, %c0_i32 : i32, i32
  }
  func.func @transform_1(%arg0: i32) -> (i32, i32) {
    %c0_i32 = arith.constant 0 : i32
    %c0_i32_0 = arith.constant 0 : i32
    %c0_i32_1 = arith.constant 0 : i32
    return %c0_i32, %c0_i32_0 : i32, i32
  }
  func.func @transform_2(%arg0: i32) -> (i32, i32) {
    %c0_i32 = arith.constant 0 : i32
    %c0_i32_0 = arith.constant 0 : i32
    %c0_i32_1 = arith.constant 0 : i32
    return %c0_i32, %c0_i32_0 : i32, i32
  }
  func.func @transform_3(%arg0: i32) -> (i32, i32) {
    %c0_i32 = arith.constant 0 : i32
    %c0_i32_0 = arith.constant 0 : i32
    return %arg0, %c0_i32 : i32, i32
  }
}

module attributes {stable_mosaic.version = 11 : i64} {
  func.func @_gcn_layer_kernel(%arg0: i32, %arg1: i32, %arg2: memref<128x128xbf16, #tpu.memory_space<vmem>>, %arg3: memref<128x128xf32, #tpu.memory_space<vmem>>, %arg4: memref<128x128xf32, #tpu.memory_space<vmem>>, %arg5: memref<128x128xbf16, #tpu.memory_space<vmem>>, %arg6: memref<1x128xf32, #tpu.memory_space<vmem>>, %arg7: memref<128x1xf32, #tpu.memory_space<vmem>>, %arg8: memref<1x128xf32, #tpu.memory_space<vmem>>, %arg9: memref<1x128xf32, #tpu.memory_space<vmem>>, %arg10: memref<128x128xf32, #tpu.memory_space<vmem>>, %arg11: memref<128x128xf32, #tpu.memory_space<vmem>>) attributes {dimension_semantics = [#tpu.dimension_semantics<parallel>, #tpu.dimension_semantics<arbitrary>], iteration_bounds = array<i64: 1, 1>, scalar_prefetch = 0 : i64, scratch_operands = 1 : i64, tpu.core_type = #tpu.core_type<tc>, window_params = [{transform_indices = @transform_0, window_bounds = array<i64: 128, 128>}, {transform_indices = @transform_1, window_bounds = array<i64: 128, 128>}, {transform_indices = @transform_2, window_bounds = array<i64: 128, 128>}, {pipeline_mode = #tpu.pipeline_mode<synchronous>, transform_indices = @transform_3, window_bounds = array<i64: 128, 128>}, {pipeline_mode = #tpu.pipeline_mode<synchronous>, transform_indices = @transform_4, window_bounds = array<i64: 1, 128>}, {transform_indices = @transform_5, window_bounds = array<i64: 128, 1>}, {pipeline_mode = #tpu.pipeline_mode<synchronous>, transform_indices = @transform_6, window_bounds = array<i64: 1, 128>}, {pipeline_mode = #tpu.pipeline_mode<synchronous>, transform_indices = @transform_7, window_bounds = array<i64: 1, 128>}, {transform_indices = @transform_8, window_bounds = array<i64: 128, 128>}]} {
    %c0_i32 = arith.constant 0 : i32
    %0 = arith.cmpi eq, %arg1, %c0_i32 : i32
    %1 = arith.extui %0 : i1 to i32
    %c0_i32_0 = arith.constant 0 : i32
    %2 = arith.cmpi ne, %1, %c0_i32_0 : i32
    scf.if %2 {
      %cst_10 = arith.constant 0.000000e+00 : f32
      %13 = vector.broadcast %cst_10 : f32 to vector<128x128xf32>
      %c0_11 = arith.constant 0 : index
      %c0_12 = arith.constant 0 : index
      %14 = vector.load %arg11[%c0_11, %c0_12] : memref<128x128xf32, #tpu.memory_space<vmem>>, vector<128x128xf32>
      tpu.vector_store %arg11[%c0_11, %c0_12], %13 {strides = array<i32>} : memref<128x128xf32, #tpu.memory_space<vmem>>, vector<128x128xf32>,
    } else {
    }
    %c0 = arith.constant 0 : index
    %c0_1 = arith.constant 0 : index
    %3 = vector.load %arg11[%c0, %c0_1] : memref<128x128xf32, #tpu.memory_space<vmem>>, vector<128x128xf32>
    %c0_2 = arith.constant 0 : index
    %c0_3 = arith.constant 0 : index
    %4 = vector.load %arg2[%c0_2, %c0_3] : memref<128x128xbf16, #tpu.memory_space<vmem>>, vector<128x128xbf16>
    %c0_4 = arith.constant 0 : index
    %c0_5 = arith.constant 0 : index
    %5 = vector.load %arg3[%c0_4, %c0_5] : memref<128x128xf32, #tpu.memory_space<vmem>>, vector<128x128xf32>
    %6 = arith.truncf %5 : vector<128x128xf32> to vector<128x128xbf16>
    %cst = arith.constant dense<0.000000e+00> : vector<128x128xf32>
    %7 = tpu.matmul %4, %6, %cst {dimension_numbers = #tpu.dot_dimension_numbers<[1], [0], [0], [1], [0, 0, 1, 1], [], []>} : vector<128x128xbf16>, vector<128x128xbf16>, vector<128x128xf32> -> vector<128x128xf32>
    %8 = arith.addf %3, %7 : vector<128x128xf32>
    %c0_6 = arith.constant 0 : index
    %c0_7 = arith.constant 0 : index
    %9 = vector.load %arg11[%c0_6, %c0_7] : memref<128x128xf32, #tpu.memory_space<vmem>>, vector<128x128xf32>
    tpu.vector_store %arg11[%c0_6, %c0_7], %8 {strides = array<i32>} : memref<128x128xf32, #tpu.memory_space<vmem>>, vector<128x128xf32>,
    %c0_i32_8 = arith.constant 0 : i32
    %10 = arith.cmpi eq, %arg1, %c0_i32_8 : i32
    %11 = arith.extui %10 : i1 to i32
    %c0_i32_9 = arith.constant 0 : i32
    %12 = arith.cmpi ne, %11, %c0_i32_9 : i32
    scf.if %12 {
      %c0_10 = arith.constant 0 : index
      %c0_11 = arith.constant 0 : index
      %13 = vector.load %arg11[%c0_10, %c0_11] : memref<128x128xf32, #tpu.memory_space<vmem>>, vector<128x128xf32>
      %14 = arith.truncf %13 : vector<128x128xf32> to vector<128x128xbf16>
      %c0_12 = arith.constant 0 : index
      %c0_13 = arith.constant 0 : index
      %15 = vector.load %arg5[%c0_12, %c0_13] : memref<128x128xbf16, #tpu.memory_space<vmem>>, vector<128x128xbf16>
      %cst_14 = arith.constant dense<0.000000e+00> : vector<128x128xf32>
      %16 = tpu.matmul %14, %15, %cst_14 {dimension_numbers = #tpu.dot_dimension_numbers<[1], [0], [0], [1], [0, 0, 1, 1], [], []>} : vector<128x128xbf16>, vector<128x128xbf16>, vector<128x128xf32> -> vector<128x128xf32>
      %c0_15 = arith.constant 0 : index
      %c0_16 = arith.constant 0 : index
      %17 = vector.load %arg6[%c0_15, %c0_16] : memref<1x128xf32, #tpu.memory_space<vmem>>, vector<1x128xf32>
      %18 = vector.broadcast %17 : vector<1x128xf32> to vector<128x128xf32>
      %19 = arith.addf %16, %18 : vector<128x128xf32>
      %c0_17 = arith.constant 0 : index
      %c0_18 = arith.constant 0 : index
      %20 = vector.load %arg7[%c0_17, %c0_18] : memref<128x1xf32, #tpu.memory_space<vmem>>, vector<128x1xf32>
      %21 = vector.broadcast %20 : vector<128x1xf32> to vector<128x128xf32>
      %22 = arith.mulf %19, %21 : vector<128x128xf32>
      %c0_19 = arith.constant 0 : index
      %c0_20 = arith.constant 0 : index
      %23 = vector.load %arg8[%c0_19, %c0_20] : memref<1x128xf32, #tpu.memory_space<vmem>>, vector<1x128xf32>
      %24 = vector.broadcast %23 : vector<1x128xf32> to vector<128x128xf32>
      %25 = arith.mulf %22, %24 : vector<128x128xf32>
      %c0_21 = arith.constant 0 : index
      %c0_22 = arith.constant 0 : index
      %26 = vector.load %arg9[%c0_21, %c0_22] : memref<1x128xf32, #tpu.memory_space<vmem>>, vector<1x128xf32>
      %27 = vector.broadcast %26 : vector<1x128xf32> to vector<128x128xf32>
      %28 = arith.addf %25, %27 : vector<128x128xf32>
      %cst_23 = arith.constant 0.000000e+00 : f32
      %29 = vector.broadcast %cst_23 : f32 to vector<128x128xf32>
      %30 = arith.maximumf %28, %29 : vector<128x128xf32>
      %c0_24 = arith.constant 0 : index
      %c0_25 = arith.constant 0 : index
      %31 = vector.load %arg4[%c0_24, %c0_25] : memref<128x128xf32, #tpu.memory_space<vmem>>, vector<128x128xf32>
      %32 = arith.addf %31, %30 : vector<128x128xf32>
      %c0_26 = arith.constant 0 : index
      %c0_27 = arith.constant 0 : index
      %33 = vector.load %arg10[%c0_26, %c0_27] : memref<128x128xf32, #tpu.memory_space<vmem>>, vector<128x128xf32>
      tpu.vector_store %arg10[%c0_26, %c0_27], %32 {strides = array<i32>} : memref<128x128xf32, #tpu.memory_space<vmem>>, vector<128x128xf32>,
    } else {
    }
    return
  }
  func.func @transform_0(%arg0: i32, %arg1: i32) -> (i32, i32) {
    %c0_i32 = arith.constant 0 : i32
    return %arg0, %arg1 : i32, i32
  }
  func.func @transform_1(%arg0: i32, %arg1: i32) -> (i32, i32) {
    %c0_i32 = arith.constant 0 : i32
    %c0_i32_0 = arith.constant 0 : i32
    return %arg1, %c0_i32 : i32, i32
  }
  func.func @transform_2(%arg0: i32, %arg1: i32) -> (i32, i32) {
    %c0_i32 = arith.constant 0 : i32
    %c0_i32_0 = arith.constant 0 : i32
    return %arg0, %c0_i32 : i32, i32
  }
  func.func @transform_3(%arg0: i32, %arg1: i32) -> (i32, i32) {
    %c0_i32 = arith.constant 0 : i32
    %c0_i32_0 = arith.constant 0 : i32
    %c0_i32_1 = arith.constant 0 : i32
    return %c0_i32, %c0_i32_0 : i32, i32
  }
  func.func @transform_4(%arg0: i32, %arg1: i32) -> (i32, i32) {
    %c0_i32 = arith.constant 0 : i32
    %c0_i32_0 = arith.constant 0 : i32
    %c0_i32_1 = arith.constant 0 : i32
    return %c0_i32, %c0_i32_0 : i32, i32
  }
  func.func @transform_5(%arg0: i32, %arg1: i32) -> (i32, i32) {
    %c0_i32 = arith.constant 0 : i32
    %c0_i32_0 = arith.constant 0 : i32
    return %arg0, %c0_i32 : i32, i32
  }
  func.func @transform_6(%arg0: i32, %arg1: i32) -> (i32, i32) {
    %c0_i32 = arith.constant 0 : i32
    %c0_i32_0 = arith.constant 0 : i32
    %c0_i32_1 = arith.constant 0 : i32
    return %c0_i32, %c0_i32_0 : i32, i32
  }
  func.func @transform_7(%arg0: i32, %arg1: i32) -> (i32, i32) {
    %c0_i32 = arith.constant 0 : i32
    %c0_i32_0 = arith.constant 0 : i32
    %c0_i32_1 = arith.constant 0 : i32
    return %c0_i32, %c0_i32_0 : i32, i32
  }
  func.func @transform_8(%arg0: i32, %arg1: i32) -> (i32, i32) {
    %c0_i32 = arith.constant 0 : i32
    %c0_i32_0 = arith.constant 0 : i32
    return %arg0, %c0_i32 : i32, i32
  }
}

module attributes {stable_mosaic.version = 11 : i64} {
  func.func @_edge_pre_kernel(%arg0: i32, %arg1: memref<128x128xf32, #tpu.memory_space<vmem>>, %arg2: memref<128x128xbf16, #tpu.memory_space<vmem>>, %arg3: memref<128x128xbf16, #tpu.memory_space<vmem>>, %arg4: memref<128x128xf32, #tpu.memory_space<vmem>>, %arg5: memref<128x128xf32, #tpu.memory_space<vmem>>) attributes {dimension_semantics = [#tpu.dimension_semantics<parallel>], iteration_bounds = array<i64: 1>, scalar_prefetch = 0 : i64, scratch_operands = 0 : i64, tpu.core_type = #tpu.core_type<tc>, window_params = [{transform_indices = @transform_0, window_bounds = array<i64: 128, 128>}, {pipeline_mode = #tpu.pipeline_mode<synchronous>, transform_indices = @transform_1, window_bounds = array<i64: 128, 128>}, {pipeline_mode = #tpu.pipeline_mode<synchronous>, transform_indices = @transform_2, window_bounds = array<i64: 128, 128>}, {transform_indices = @transform_3, window_bounds = array<i64: 128, 128>}, {transform_indices = @transform_4, window_bounds = array<i64: 128, 128>}]} {
    %c0 = arith.constant 0 : index
    %c0_0 = arith.constant 0 : index
    %0 = vector.load %arg1[%c0, %c0_0] : memref<128x128xf32, #tpu.memory_space<vmem>>, vector<128x128xf32>
    %1 = arith.truncf %0 : vector<128x128xf32> to vector<128x128xbf16>
    %c0_1 = arith.constant 0 : index
    %c0_2 = arith.constant 0 : index
    %2 = vector.load %arg2[%c0_1, %c0_2] : memref<128x128xbf16, #tpu.memory_space<vmem>>, vector<128x128xbf16>
    %cst = arith.constant dense<0.000000e+00> : vector<128x128xf32>
    %3 = tpu.matmul %1, %2, %cst {dimension_numbers = #tpu.dot_dimension_numbers<[1], [0], [0], [1], [0, 0, 1, 1], [], []>} : vector<128x128xbf16>, vector<128x128xbf16>, vector<128x128xf32> -> vector<128x128xf32>
    %c0_3 = arith.constant 0 : index
    %c0_4 = arith.constant 0 : index
    %4 = vector.load %arg4[%c0_3, %c0_4] : memref<128x128xf32, #tpu.memory_space<vmem>>, vector<128x128xf32>
    tpu.vector_store %arg4[%c0_3, %c0_4], %3 {strides = array<i32>} : memref<128x128xf32, #tpu.memory_space<vmem>>, vector<128x128xf32>,
    %c0_5 = arith.constant 0 : index
    %c0_6 = arith.constant 0 : index
    %5 = vector.load %arg3[%c0_5, %c0_6] : memref<128x128xbf16, #tpu.memory_space<vmem>>, vector<128x128xbf16>
    %cst_7 = arith.constant dense<0.000000e+00> : vector<128x128xf32>
    %6 = tpu.matmul %1, %5, %cst_7 {dimension_numbers = #tpu.dot_dimension_numbers<[1], [0], [0], [1], [0, 0, 1, 1], [], []>} : vector<128x128xbf16>, vector<128x128xbf16>, vector<128x128xf32> -> vector<128x128xf32>
    %c0_8 = arith.constant 0 : index
    %c0_9 = arith.constant 0 : index
    %7 = vector.load %arg5[%c0_8, %c0_9] : memref<128x128xf32, #tpu.memory_space<vmem>>, vector<128x128xf32>
    tpu.vector_store %arg5[%c0_8, %c0_9], %6 {strides = array<i32>} : memref<128x128xf32, #tpu.memory_space<vmem>>, vector<128x128xf32>,
    return
  }
  func.func @transform_0(%arg0: i32) -> (i32, i32) {
    %c0_i32 = arith.constant 0 : i32
    %c0_i32_0 = arith.constant 0 : i32
    return %arg0, %c0_i32 : i32, i32
  }
  func.func @transform_1(%arg0: i32) -> (i32, i32) {
    %c0_i32 = arith.constant 0 : i32
    %c0_i32_0 = arith.constant 0 : i32
    %c0_i32_1 = arith.constant 0 : i32
    return %c0_i32, %c0_i32_0 : i32, i32
  }
  func.func @transform_2(%arg0: i32) -> (i32, i32) {
    %c0_i32 = arith.constant 0 : i32
    %c0_i32_0 = arith.constant 0 : i32
    %c0_i32_1 = arith.constant 0 : i32
    return %c0_i32, %c0_i32_0 : i32, i32
  }
  func.func @transform_3(%arg0: i32) -> (i32, i32) {
    %c0_i32 = arith.constant 0 : i32
    %c0_i32_0 = arith.constant 0 : i32
    return %arg0, %c0_i32 : i32, i32
  }
  func.func @transform_4(%arg0: i32) -> (i32, i32) {
    %c0_i32 = arith.constant 0 : i32
    %c0_i32_0 = arith.constant 0 : i32
    return %arg0, %c0_i32 : i32, i32
  }
}

module attributes {stable_mosaic.version = 11 : i64} {
  func.func @_edge_tail_kernel(%arg0: i32, %arg1: memref<128x128xf32, #tpu.memory_space<vmem>>, %arg2: memref<1x128xf32, #tpu.memory_space<vmem>>, %arg3: memref<128x128xbf16, #tpu.memory_space<vmem>>, %arg4: memref<1x128xf32, #tpu.memory_space<vmem>>, %arg5: memref<128x128xbf16, #tpu.memory_space<vmem>>, %arg6: memref<1x128xf32, #tpu.memory_space<vmem>>, %arg7: memref<128x128xf32, #tpu.memory_space<vmem>>) attributes {dimension_semantics = [#tpu.dimension_semantics<parallel>], iteration_bounds = array<i64: 1>, scalar_prefetch = 0 : i64, scratch_operands = 0 : i64, tpu.core_type = #tpu.core_type<tc>, window_params = [{transform_indices = @transform_0, window_bounds = array<i64: 128, 128>}, {pipeline_mode = #tpu.pipeline_mode<synchronous>, transform_indices = @transform_1, window_bounds = array<i64: 1, 128>}, {pipeline_mode = #tpu.pipeline_mode<synchronous>, transform_indices = @transform_2, window_bounds = array<i64: 128, 128>}, {pipeline_mode = #tpu.pipeline_mode<synchronous>, transform_indices = @transform_3, window_bounds = array<i64: 1, 128>}, {pipeline_mode = #tpu.pipeline_mode<synchronous>, transform_indices = @transform_4, window_bounds = array<i64: 128, 128>}, {pipeline_mode = #tpu.pipeline_mode<synchronous>, transform_indices = @transform_5, window_bounds = array<i64: 1, 128>}, {transform_indices = @transform_6, window_bounds = array<i64: 128, 128>}]} {
    %c0 = arith.constant 0 : index
    %c0_0 = arith.constant 0 : index
    %0 = vector.load %arg1[%c0, %c0_0] : memref<128x128xf32, #tpu.memory_space<vmem>>, vector<128x128xf32>
    %c0_1 = arith.constant 0 : index
    %c0_2 = arith.constant 0 : index
    %1 = vector.load %arg2[%c0_1, %c0_2] : memref<1x128xf32, #tpu.memory_space<vmem>>, vector<1x128xf32>
    %2 = vector.broadcast %1 : vector<1x128xf32> to vector<128x128xf32>
    %3 = arith.addf %0, %2 : vector<128x128xf32>
    %cst = arith.constant 0.000000e+00 : f32
    %4 = vector.broadcast %cst : f32 to vector<128x128xf32>
    %5 = arith.maximumf %3, %4 : vector<128x128xf32>
    %6 = arith.truncf %5 : vector<128x128xf32> to vector<128x128xbf16>
    %c0_3 = arith.constant 0 : index
    %c0_4 = arith.constant 0 : index
    %7 = vector.load %arg3[%c0_3, %c0_4] : memref<128x128xbf16, #tpu.memory_space<vmem>>, vector<128x128xbf16>
    %cst_5 = arith.constant dense<0.000000e+00> : vector<128x128xf32>
    %8 = tpu.matmul %6, %7, %cst_5 {dimension_numbers = #tpu.dot_dimension_numbers<[1], [0], [0], [1], [0, 0, 1, 1], [], []>} : vector<128x128xbf16>, vector<128x128xbf16>, vector<128x128xf32> -> vector<128x128xf32>
    %c0_6 = arith.constant 0 : index
    %c0_7 = arith.constant 0 : index
    %9 = vector.load %arg4[%c0_6, %c0_7] : memref<1x128xf32, #tpu.memory_space<vmem>>, vector<1x128xf32>
    %10 = vector.broadcast %9 : vector<1x128xf32> to vector<128x128xf32>
    %11 = arith.addf %8, %10 : vector<128x128xf32>
    %cst_8 = arith.constant 0.000000e+00 : f32
    %12 = vector.broadcast %cst_8 : f32 to vector<128x128xf32>
    %13 = arith.maximumf %11, %12 : vector<128x128xf32>
    %14 = arith.truncf %13 : vector<128x128xf32> to vector<128x128xbf16>
    %c0_9 = arith.constant 0 : index
    %c0_10 = arith.constant 0 : index
    %15 = vector.load %arg5[%c0_9, %c0_10] : memref<128x128xbf16, #tpu.memory_space<vmem>>, vector<128x128xbf16>
    %cst_11 = arith.constant dense<0.000000e+00> : vector<128x128xf32>
    %16 = tpu.matmul %14, %15, %cst_11 {dimension_numbers = #tpu.dot_dimension_numbers<[1], [0], [0], [1], [0, 0, 1, 1], [], []>} : vector<128x128xbf16>, vector<128x128xbf16>, vector<128x128xf32> -> vector<128x128xf32>
    %c0_12 = arith.constant 0 : index
    %c0_13 = arith.constant 0 : index
    %17 = vector.load %arg6[%c0_12, %c0_13] : memref<1x128xf32, #tpu.memory_space<vmem>>, vector<1x128xf32>
    %18 = vector.broadcast %17 : vector<1x128xf32> to vector<128x128xf32>
    %19 = arith.addf %16, %18 : vector<128x128xf32>
    %c0_14 = arith.constant 0 : index
    %c0_15 = arith.constant 0 : index
    %20 = vector.load %arg7[%c0_14, %c0_15] : memref<128x128xf32, #tpu.memory_space<vmem>>, vector<128x128xf32>
    tpu.vector_store %arg7[%c0_14, %c0_15], %19 {strides = array<i32>} : memref<128x128xf32, #tpu.memory_space<vmem>>, vector<128x128xf32>,
    return
  }
  func.func @transform_0(%arg0: i32) -> (i32, i32) {
    %c0_i32 = arith.constant 0 : i32
    %c0_i32_0 = arith.constant 0 : i32
    return %arg0, %c0_i32 : i32, i32
  }
  func.func @transform_1(%arg0: i32) -> (i32, i32) {
    %c0_i32 = arith.constant 0 : i32
    %c0_i32_0 = arith.constant 0 : i32
    %c0_i32_1 = arith.constant 0 : i32
    return %c0_i32, %c0_i32_0 : i32, i32
  }
  func.func @transform_2(%arg0: i32) -> (i32, i32) {
    %c0_i32 = arith.constant 0 : i32
    %c0_i32_0 = arith.constant 0 : i32
    %c0_i32_1 = arith.constant 0 : i32
    return %c0_i32, %c0_i32_0 : i32, i32
  }
  func.func @transform_3(%arg0: i32) -> (i32, i32) {
    %c0_i32 = arith.constant 0 : i32
    %c0_i32_0 = arith.constant 0 : i32
    %c0_i32_1 = arith.constant 0 : i32
    return %c0_i32, %c0_i32_0 : i32, i32
  }
  func.func @transform_4(%arg0: i32) -> (i32, i32) {
    %c0_i32 = arith.constant 0 : i32
    %c0_i32_0 = arith.constant 0 : i32
    %c0_i32_1 = arith.constant 0 : i32
    return %c0_i32, %c0_i32_0 : i32, i32
  }
  func.func @transform_5(%arg0: i32) -> (i32, i32) {
    %c0_i32 = arith.constant 0 : i32
    %c0_i32_0 = arith.constant 0 : i32
    %c0_i32_1 = arith.constant 0 : i32
    return %c0_i32, %c0_i32_0 : i32, i32
  }
  func.func @transform_6(%arg0: i32) -> (i32, i32) {
    %c0_i32 = arith.constant 0 : i32
    %c0_i32_0 = arith.constant 0 : i32
    return %arg0, %c0_i32 : i32, i32
  }
}

</mosaic_0001>

<llo_original>
// kernel: gcn_net_forward.5
$region0: #{gcn_net_forward.5}
  #allocation0 [shape = 'u32[]', space=smem, size = 0x4, offset = 0x4, fixed_abs, tag = 'smem constant byte address 0x4 - core index']
  #allocation1 [shape = 'u32[144,128]{1,0:T(1,128)}', space=vmem, size = 0x12000, scoped, tag = 'internal scratch']
  %s0 = inlined_call_operand.vmem [shape: f32[128,128], index: 0, kind: input, shape index: {}]
  %s1 = inlined_call_operand.hbm [shape: bf16[128,128], index: 1, kind: input, shape index: {}]
  %s2 = inlined_call_operand.vmem [shape: f32[1,128], index: 2, kind: input, shape index: {}]
  %s3 = inlined_call_operand.vmem [shape: f32[128,128], index: 3, kind: output, shape index: {}]
  %s4 = sld [smem:[#allocation0]]
  $region26: #{gcn_net_forward.5} parent=0
    _
  %s6 = ssub.s32 1, %s4
  %s7 = scalar_select 0, %s6, %s4
  $region1: #{gcn_net_forward.5} parent=0
    #allocation2 [shape = 'u8[32768]{0}', space=vmem, size = 0x8000, scoped, tag = 'input window, operand 1, single buffered']
    #allocation3 [shape = 's32[1]{0}', space=sflag, size = 0x4, scoped, tag = 'scoped memory for gcn_net_forward.5']
    %8 = vsyncpa [#allocation3], 0
    // Predicated region
    $region2: #{gcn_net_forward.5} parent=1 // pred_check
      _
    $region3: #{gcn_net_forward.5} parent=1 // pred_check_branch
      %10 = sbr.rel (0) target = $region5
    $region4: #{gcn_net_forward.5} parent=1 // pred_region
      _
    $region5: #{gcn_net_forward.5} parent=1 // pred_fallthru
      _
    // Predicated region
    $region6: #{gcn_net_forward.5} parent=1 // pred_check
      _
    $region7: #{gcn_net_forward.5} parent=1 // pred_check_branch
      %12 = sbr.rel (0) target = $region9
    $region8: #{gcn_net_forward.5} parent=1 // pred_region
      %s14 = ssub.s32 1024, 1024
      %15 = vsyncadd [#allocation3], %s14
      %s16 = sshll.u32 [#allocation2], 4
      %s17 = int_to_ptr.vmem [resolvable:$true] %s16
      %22 = dma.hbm_to_vmem [thread:$0]  %s1, 1024, %s17, [#allocation3], 64, 64, 4
    $region9: #{gcn_net_forward.5} parent=1 // pred_fallthru
      _
    // Predicated region
    $region10: #{gcn_net_forward.5} parent=1 // pred_check
      _
    $region11: #{gcn_net_forward.5} parent=1 // pred_check_branch
      %24 = sbr.rel (0) target = $region13
    $region12: #{gcn_net_forward.5} parent=1 // pred_region
      _
    $region13: #{gcn_net_forward.5} parent=1 // pred_fallthru
      _
    // Predicated region
    $region14: #{gcn_net_forward.5} parent=1 // pred_check
      _
    $region15: #{gcn_net_forward.5} parent=1 // pred_check_branch
      %26 = sbr.rel (0) target = $region17
    $region16: #{gcn_net_forward.5} parent=1 // pred_region
      %27 = dma.done [#allocation3], 1024
    $region17: #{gcn_net_forward.5} parent=1 // pred_fallthru
      _
    %v29 = vld [vmem:[%s0] sm:$0xff]
    %v30 = vld [vmem:[%s0 + $0x8] sm:$0xff]
    %v31 = vld [vmem:[%s0 + $0x10] sm:$0xff]
    %v32 = vld [vmem:[%s0 + $0x18] sm:$0xff]
    %v33 = vld [vmem:[%s0 + $0x20] sm:$0xff]
    %v34 = vld [vmem:[%s0 + $0x28] sm:$0xff]
    %v35 = vld [vmem:[%s0 + $0x30] sm:$0xff]
    %v36 = vld [vmem:[%s0 + $0x38] sm:$0xff]
    %v37 = vld [vmem:[%s0 + $0x40] sm:$0xff]
    %v38 = vld [vmem:[%s0 + $0x48] sm:$0xff]
    %v39 = vld [vmem:[%s0 + $0x50] sm:$0xff]
    %v40 = vld [vmem:[%s0 + $0x58] sm:$0xff]
    %v41 = vld [vmem:[%s0 + $0x60] sm:$0xff]
    %v42 = vld [vmem:[%s0 + $0x68] sm:$0xff]
    %v43 = vld [vmem:[%s0 + $0x70] sm:$0xff]
    %v44 = vld [vmem:[%s0 + $0x78] sm:$0xff]
    %v45 = vpack.c.bf16 %v30, %v29
    %v46 = vpack.c.bf16 %v32, %v31
    %v47 = vpack.c.bf16 %v34, %v33
    %v48 = vpack.c.bf16 %v36, %v35
    %v49 = vpack.c.bf16 %v38, %v37
    %v50 = vpack.c.bf16 %v40, %v39
    %v51 = vpack.c.bf16 %v42, %v41
    %v52 = vpack.c.bf16 %v44, %v43
    %v53 = vld [vmem:[#allocation2] sm:$0xf]
    %v54 = vld [vmem:[#allocation2 + $0x4] sm:$0xf]
    %v55 = vld [vmem:[#allocation2 + $0x8] sm:$0xf]
    %v56 = vld [vmem:[#allocation2 + $0xc] sm:$0xf]
    %v57 = vld [vmem:[#allocation2 + $0x10] sm:$0xf]
    %v58 = vld [vmem:[#allocation2 + $0x14] sm:$0xf]
    %v59 = vld [vmem:[#allocation2 + $0x18] sm:$0xf]
    %v60 = vld [vmem:[#allocation2 + $0x1c] sm:$0xf]
    %v61 = vld [vmem:[#allocation2 + $0x20] sm:$0xf]
    %v62 = vld [vmem:[#allocation2 + $0x24] sm:$0xf]
    %v63 = vld [vmem:[#allocation2 + $0x28] sm:$0xf]
    %v64 = vld [vmem:[#allocation2 + $0x2c] sm:$0xf]
    %v65 = vld [vmem:[#allocation2 + $0x30] sm:$0xf]
    %v66 = vld [vmem:[#allocation2 + $0x34] sm:$0xf]
    %v67 = vld [vmem:[#allocation2 + $0x38] sm:$0xf]
    %v68 = vld [vmem:[#allocation2 + $0x3c] sm:$0xf]
    %v69 = vld [vmem:[%s2] sm:$0x1]
    %v71 = vlaneseq
    %v72 = vshrl.u32 %v71, 7
    %v73 = vsub.s32 0, %v72
    %v74 = vrot.slane %v69, %v73
    %v92 = vunpack.c.l.b16 %v53
    %v93 = vunpack.c.l.b16 %v54
    %v94 = vunpack.c.l.b16 %v55
    %v95 = vunpack.c.l.b16 %v56
    %v96 = vunpack.c.l.b16 %v57
    %v97 = vunpack.c.l.b16 %v58
    %v98 = vunpack.c.l.b16 %v59
    %v99 = vunpack.c.l.b16 %v60
    %v100 = vunpack.c.l.b16 %v61
    %v101 = vunpack.c.l.b16 %v62
    %v102 = vunpack.c.l.b16 %v63
    %v103 = vunpack.c.l.b16 %v64
    %v104 = vunpack.c.l.b16 %v65
    %v105 = vunpack.c.l.b16 %v66
    %v106 = vunpack.c.l.b16 %v67
    %v107 = vunpack.c.l.b16 %v68
    %v108 = vpack.c.b16 %v93, %v92
    %v109 = vpack.c.b16 %v95, %v94
    %v110 = vpack.c.b16 %v97, %v96
    %v111 = vpack.c.b16 %v99, %v98
    %v112 = vpack.c.b16 %v101, %v100
    %v113 = vpack.c.b16 %v103, %v102
    %v114 = vpack.c.b16 %v105, %v104
    %v115 = vpack.c.b16 %v107, %v106
    %124 = vmatprep.subr.bf16.mxu0 0
    %125 = vmatpush1.bf16.msra.mxu0 %v115
    %126 = vmatprep.subr.bf16.mxu0 0
    %127 = vmatpush1.bf16.msra.mxu0 %v114
    %128 = vmatprep.subr.bf16.mxu0 0
    %129 = vmatpush1.bf16.msra.mxu0 %v113
    %130 = vmatprep.subr.bf16.mxu0 0
    %131 = vmatpush1.bf16.msra.mxu0 %v112
    %132 = vmatprep.subr.bf16.mxu0 0
    %133 = vmatpush1.bf16.msra.mxu0 %v111
    %134 = vmatprep.subr.bf16.mxu0 0
    %135 = vmatpush1.bf16.msra.mxu0 %v110
    %136 = vmatprep.subr.bf16.mxu0 0
    %137 = vmatpush1.bf16.msra.mxu0 %v109
    %138 = vmatprep.subr.bf16.mxu0 0
    %139 = vmatpush1.bf16.msra.mxu0 %v108
    %140 = vmatprep.subr.bf16.mxu0 0
    %141 = vmatpush2.bf16.msra.mxu0 0
    %142 = vmatprep.subr.bf16.mxu0 0
    %143 = vmatpush2.bf16.msra.mxu0 0
    %144 = vmatprep.subr.bf16.mxu0 0
    %145 = vmatpush2.bf16.msra.mxu0 0
    %146 = vmatprep.subr.bf16.mxu0 0
    %147 = vmatpush2.bf16.msra.mxu0 0
    %148 = vmatprep.subr.bf16.mxu0 0
    %149 = vmatpush2.bf16.msra.mxu0 0
    %150 = vmatprep.subr.bf16.mxu0 0
    %151 = vmatpush2.bf16.msra.mxu0 0
    %152 = vmatprep.subr.bf16.mxu0 0
    %153 = vmatpush2.bf16.msra.mxu0 0
    %154 = vmatprep.subr.bf16.mxu0 0
    %155 = vmatpush2.bf16.msra.mxu0 0
    %156 = vmatprep.mubr.bf16.mxu0 0
    %157 = vmatmul.mubr.bf16.gmra.mxu0 %v45
    %v158 = vpop.f32.mrf.mxu0
    %v159 = vadd.f32 %v74, %v158
    %v160 = vpop.f32.mrf.mxu0
    %v161 = vpop.f32.mrf.mxu0
    %v162 = vadd.f32 %v74, %v161
    %v163 = vpop.f32.mrf.mxu0
    %164 = vmatprep.mubr.bf16.mxu0 0
    %165 = vmatmul.mubr.bf16.gmra.mxu0 %v46
    %v166 = vpop.f32.mrf.mxu0
    %v167 = vadd.f32 %v74, %v166
    %v168 = vpop.f32.mrf.mxu0
    %v169 = vpop.f32.mrf.mxu0
    %v170 = vadd.f32 %v74, %v169
    %v171 = vpop.f32.mrf.mxu0
    %172 = vmatprep.mubr.bf16.mxu0 0
    %173 = vmatmul.mubr.bf16.gmra.mxu0 %v47
    %v174 = vpop.f32.mrf.mxu0
    %v175 = vadd.f32 %v74, %v174
    %v176 = vpop.f32.mrf.mxu0
    %v177 = vpop.f32.mrf.mxu0
    %v178 = vadd.f32 %v74, %v177
    %v179 = vpop.f32.mrf.mxu0
    %180 = vmatprep.mubr.bf16.mxu0 0
    %181 = vmatmul.mubr.bf16.gmra.mxu0 %v48
    %v182 = vpop.f32.mrf.mxu0
    %v183 = vadd.f32 %v74, %v182
    %v184 = vpop.f32.mrf.mxu0
    %v185 = vpop.f32.mrf.mxu0
    %v186 = vadd.f32 %v74, %v185
    %v187 = vpop.f32.mrf.mxu0
    %188 = vmatprep.mubr.bf16.mxu0 0
    %189 = vmatmul.mubr.bf16.gmra.mxu0 %v49
    %v190 = vpop.f32.mrf.mxu0
    %v191 = vadd.f32 %v74, %v190
    %v192 = vpop.f32.mrf.mxu0
    %v193 = vpop.f32.mrf.mxu0
    %v194 = vadd.f32 %v74, %v193
    %v195 = vpop.f32.mrf.mxu0
    %196 = vmatprep.mubr.bf16.mxu0 0
    %197 = vmatmul.mubr.bf16.gmra.mxu0 %v50
    %v198 = vpop.f32.mrf.mxu0
    %v199 = vadd.f32 %v74, %v198
    %v200 = vpop.f32.mrf.mxu0
    %v201 = vpop.f32.mrf.mxu0
    %v202 = vadd.f32 %v74, %v201
    %v203 = vpop.f32.mrf.mxu0
    %204 = vmatprep.mubr.bf16.mxu0 0
    %205 = vmatmul.mubr.bf16.gmra.mxu0 %v51
    %v206 = vpop.f32.mrf.mxu0
    %v207 = vadd.f32 %v74, %v206
    %v208 = vpop.f32.mrf.mxu0
    %v209 = vpop.f32.mrf.mxu0
    %v210 = vadd.f32 %v74, %v209
    %v211 = vpop.f32.mrf.mxu0
    %212 = vmatprep.mubr.bf16.mxu0 0
    %213 = vmatmul.mubr.bf16.gmra.mxu0 %v52
    %v214 = vpop.f32.mrf.mxu0
    %v215 = vadd.f32 %v74, %v214
    %v216 = vpop.f32.mrf.mxu0
    %v217 = vpop.f32.mrf.mxu0
    %v218 = vadd.f32 %v74, %v217
    %v219 = vpop.f32.mrf.mxu0
    %220 = vdwg.mxu0
    %221 = vst [vmem:[%s3] sm:$0xff] %v159
    %222 = vst [vmem:[%s3 + $0x8] sm:$0xff] %v162
    %223 = vst [vmem:[%s3 + $0x10] sm:$0xff] %v167
    %224 = vst [vmem:[%s3 + $0x18] sm:$0xff] %v170
    %225 = vst [vmem:[%s3 + $0x20] sm:$0xff] %v175
    %226 = vst [vmem:[%s3 + $0x28] sm:$0xff] %v178
    %227 = vst [vmem:[%s3 + $0x30] sm:$0xff] %v183
    %228 = vst [vmem:[%s3 + $0x38] sm:$0xff] %v186
    %229 = vst [vmem:[%s3 + $0x40] sm:$0xff] %v191
    %230 = vst [vmem:[%s3 + $0x48] sm:$0xff] %v194
    %231 = vst [vmem:[%s3 + $0x50] sm:$0xff] %v199
    %232 = vst [vmem:[%s3 + $0x58] sm:$0xff] %v202
    %233 = vst [vmem:[%s3 + $0x60] sm:$0xff] %v207
    %234 = vst [vmem:[%s3 + $0x68] sm:$0xff] %v210
    %235 = vst [vmem:[%s3 + $0x70] sm:$0xff] %v215
    %236 = vst [vmem:[%s3 + $0x78] sm:$0xff] %v218
    // Predicated region
    $region18: #{gcn_net_forward.5} parent=1 // pred_check
      _
    $region19: #{gcn_net_forward.5} parent=1 // pred_check_branch
      %238 = sbr.rel (0) target = $region21
    $region20: #{gcn_net_forward.5} parent=1 // pred_region
      _
    $region21: #{gcn_net_forward.5} parent=1 // pred_fallthru
      _
    // Predicated region
    $region22: #{gcn_net_forward.5} parent=1 // pred_check
      _
    $region23: #{gcn_net_forward.5} parent=1 // pred_check_branch
      %240 = sbr.rel (0) target = $region25
    $region24: #{gcn_net_forward.5} parent=1 // pred_region
      _
    $region25: #{gcn_net_forward.5} parent=1 // pred_fallthru
      _
    %241 = vsyncpa [#allocation3], 1

// kernel: gcn_net_forward.8
$region0: #{gcn_net_forward.8}
  #allocation0 [shape = 'u32[]', space=smem, size = 0x4, offset = 0x4, fixed_abs, tag = 'smem constant byte address 0x4 - core index']
  #allocation1 [shape = 'u32[144,128]{1,0:T(1,128)}', space=vmem, size = 0x12000, scoped, tag = 'internal scratch']
  %s0 = inlined_call_operand.vmem [shape: f32[128,128], index: 0, kind: input, shape index: {}]
  %s1 = inlined_call_operand.vmem [shape: bf16[128,128], index: 1, kind: input, shape index: {}]
  %s2 = inlined_call_operand.vmem [shape: bf16[128,128], index: 2, kind: input, shape index: {}]
  %s3 = inlined_call_operand.vmem [shape: f32[128,128], index: 3, kind: output, shape index: {0}]
  %s4 = inlined_call_operand.vmem [shape: f32[128,128], index: 4, kind: output, shape index: {1}]
  %5 = xla_tuple %s3, %s4
  %s6 = sld [smem:[#allocation0]]
  $region30: #{gcn_net_forward.8} parent=0
    _
  %s8 = ssub.s32 1, %s6
  %s9 = scalar_select 0, %s8, %s6
  // Predicated region
  $region2: #{gcn_net_forward.8} parent=0 // pred_check
    _
  $region3: #{gcn_net_forward.8} parent=0 // pred_check_branch
    %11 = sbr.rel (0) target = $region5
  $region4: #{gcn_net_forward.8} parent=0 // pred_region
    _
  $region5: #{gcn_net_forward.8} parent=0 // pred_fallthru
    _
  // Predicated region
  $region6: #{gcn_net_forward.8} parent=0 // pred_check
    _
  $region7: #{gcn_net_forward.8} parent=0 // pred_check_branch
    %13 = sbr.rel (0) target = $region9
  $region8: #{gcn_net_forward.8} parent=0 // pred_region
    _
  $region9: #{gcn_net_forward.8} parent=0 // pred_fallthru
    _
  // Predicated region
  $region10: #{gcn_net_forward.8} parent=0 // pred_check
    _
  $region11: #{gcn_net_forward.8} parent=0 // pred_check_branch
    %15 = sbr.rel (0) target = $region13
  $region12: #{gcn_net_forward.8} parent=0 // pred_region
    _
  $region13: #{gcn_net_forward.8} parent=0 // pred_fallthru
    _
  %v17 = vld [vmem:[%s0] sm:$0xff]
  %v18 = vld [vmem:[%s0 + $0x8] sm:$0xff]
  %v19 = vld [vmem:[%s0 + $0x10] sm:$0xff]
  %v20 = vld [vmem:[%s0 + $0x18] sm:$0xff]
  %v21 = vld [vmem:[%s0 + $0x20] sm:$0xff]
  %v22 = vld [vmem:[%s0 + $0x28] sm:$0xff]
  %v23 = vld [vmem:[%s0 + $0x30] sm:$0xff]
  %v24 = vld [vmem:[%s0 + $0x38] sm:$0xff]
  %v25 = vld [vmem:[%s0 + $0x40] sm:$0xff]
  %v26 = vld [vmem:[%s0 + $0x48] sm:$0xff]
  %v27 = vld [vmem:[%s0 + $0x50] sm:$0xff]
  %v28 = vld [vmem:[%s0 + $0x58] sm:$0xff]
  %v29 = vld [vmem:[%s0 + $0x60] sm:$0xff]
  %v30 = vld [vmem:[%s0 + $0x68] sm:$0xff]
  %v31 = vld [vmem:[%s0 + $0x70] sm:$0xff]
  %v32 = vld [vmem:[%s0 + $0x78] sm:$0xff]
  %v33 = vpack.c.bf16 %v18, %v17
  %v34 = vpack.c.bf16 %v20, %v19
  %v35 = vpack.c.bf16 %v22, %v21
  %v36 = vpack.c.bf16 %v24, %v23
  %v37 = vpack.c.bf16 %v26, %v25
  %v38 = vpack.c.bf16 %v28, %v27
  %v39 = vpack.c.bf16 %v30, %v29
  %v40 = vpack.c.bf16 %v32, %v31
  %v41 = vld [vmem:[%s1] sm:$0xf]
  %v42 = vld [vmem:[%s1 + $0x4] sm:$0xf]
  %v43 = vld [vmem:[%s1 + $0x8] sm:$0xf]
  %v44 = vld [vmem:[%s1 + $0xc] sm:$0xf]
  %v45 = vld [vmem:[%s1 + $0x10] sm:$0xf]
  %v46 = vld [vmem:[%s1 + $0x14] sm:$0xf]
  %v47 = vld [vmem:[%s1 + $0x18] sm:$0xf]
  %v48 = vld [vmem:[%s1 + $0x1c] sm:$0xf]
  %v49 = vld [vmem:[%s1 + $0x20] sm:$0xf]
  %v50 = vld [vmem:[%s1 + $0x24] sm:$0xf]
  %v51 = vld [vmem:[%s1 + $0x28] sm:$0xf]
  %v52 = vld [vmem:[%s1 + $0x2c] sm:$0xf]
  %v53 = vld [vmem:[%s1 + $0x30] sm:$0xf]
  %v54 = vld [vmem:[%s1 + $0x34] sm:$0xf]
  %v55 = vld [vmem:[%s1 + $0x38] sm:$0xf]
  %v56 = vld [vmem:[%s1 + $0x3c] sm:$0xf]
  %v73 = vunpack.c.l.b16 %v41
  %v74 = vunpack.c.l.b16 %v42
  %v75 = vunpack.c.l.b16 %v43
  %v76 = vunpack.c.l.b16 %v44
  %v77 = vunpack.c.l.b16 %v45
  %v78 = vunpack.c.l.b16 %v46
  %v79 = vunpack.c.l.b16 %v47
  %v80 = vunpack.c.l.b16 %v48
  %v81 = vunpack.c.l.b16 %v49
  %v82 = vunpack.c.l.b16 %v50
  %v83 = vunpack.c.l.b16 %v51
  %v84 = vunpack.c.l.b16 %v52
  %v85 = vunpack.c.l.b16 %v53
  %v86 = vunpack.c.l.b16 %v54
  %v87 = vunpack.c.l.b16 %v55
  %v88 = vunpack.c.l.b16 %v56
  %v89 = vpack.c.b16 %v74, %v73
  %v90 = vpack.c.b16 %v76, %v75
  %v91 = vpack.c.b16 %v78, %v77
  %v92 = vpack.c.b16 %v80, %v79
  %v93 = vpack.c.b16 %v82, %v81
  %v94 = vpack.c.b16 %v84, %v83
  %v95 = vpack.c.b16 %v86, %v85
  %v96 = vpack.c.b16 %v88, %v87
  %105 = vmatprep.subr.bf16.mxu0 0
  %106 = vmatpush1.bf16.msra.mxu0 %v96
  %107 = vmatprep.subr.bf16.mxu0 0
  %108 = vmatpush1.bf16.msra.mxu0 %v95
  %109 = vmatprep.subr.bf16.mxu0 0
  %110 = vmatpush1.bf16.msra.mxu0 %v94
  %111 = vmatprep.subr.bf16.mxu0 0
  %112 = vmatpush1.bf16.msra.mxu0 %v93
  %113 = vmatprep.subr.bf16.mxu0 0
  %114 = vmatpush1.bf16.msra.mxu0 %v92
  %115 = vmatprep.subr.bf16.mxu0 0
  %116 = vmatpush1.bf16.msra.mxu0 %v91
  %117 = vmatprep.subr.bf16.mxu0 0
  %118 = vmatpush1.bf16.msra.mxu0 %v90
  %119 = vmatprep.subr.bf16.mxu0 0
  %120 = vmatpush1.bf16.msra.mxu0 %v89
  %121 = vmatprep.subr.bf16.mxu0 0
  %122 = vmatpush2.bf16.msra.mxu0 0
  %123 = vmatprep.subr.bf16.mxu0 0
  %124 = vmatpush2.bf16.msra.mxu0 0
  %125 = vmatprep.subr.bf16.mxu0 0
  %126 = vmatpush2.bf16.msra.mxu0 0
  %127 = vmatprep.subr.bf16.mxu0 0
  %128 = vmatpush2.bf16.msra.mxu0 0
  %129 = vmatprep.subr.bf16.mxu0 0
  %130 = vmatpush2.bf16.msra.mxu0 0
  %131 = vmatprep.subr.bf16.mxu0 0
  %132 = vmatpush2.bf16.msra.mxu0 0
  %133 = vmatprep.subr.bf16.mxu0 0
  %134 = vmatpush2.bf16.msra.mxu0 0
  %135 = vmatprep.subr.bf16.mxu0 0
  %136 = vmatpush2.bf16.msra.mxu0 0
  %137 = vmatprep.mubr.bf16.mxu0 0
  %138 = vmatmul.mubr.bf16.gmra.mxu0 %v33
  %v139 = vpop.f32.mrf.mxu0
  %v140 = vadd.f32 0.0, %v139
  %v141 = vpop.f32.mrf.mxu0
  %v142 = vpop.f32.mrf.mxu0
  %v143 = vadd.f32 0.0, %v142
  %v144 = vpop.f32.mrf.mxu0
  %145 = vmatprep.mubr.bf16.mxu0 0
  %146 = vmatmul.mubr.bf16.gmra.mxu0 %v34
  %v147 = vpop.f32.mrf.mxu0
  %v148 = vadd.f32 0.0, %v147
  %v149 = vpop.f32.mrf.mxu0
  %v150 = vpop.f32.mrf.mxu0
  %v151 = vadd.f32 0.0, %v150
  %v152 = vpop.f32.mrf.mxu0
  %153 = vmatprep.mubr.bf16.mxu0 0
  %154 = vmatmul.mubr.bf16.gmra.mxu0 %v35
  %v155 = vpop.f32.mrf.mxu0
  %v156 = vadd.f32 0.0, %v155
  %v157 = vpop.f32.mrf.mxu0
  %v158 = vpop.f32.mrf.mxu0
  %v159 = vadd.f32 0.0, %v158
  %v160 = vpop.f32.mrf.mxu0
  %161 = vmatprep.mubr.bf16.mxu0 0
  %162 = vmatmul.mubr.bf16.gmra.mxu0 %v36
  %v163 = vpop.f32.mrf.mxu0
  %v164 = vadd.f32 0.0, %v163
  %v165 = vpop.f32.mrf.mxu0
  %v166 = vpop.f32.mrf.mxu0
  %v167 = vadd.f32 0.0, %v166
  %v168 = vpop.f32.mrf.mxu0
  %169 = vmatprep.mubr.bf16.mxu0 0
  %170 = vmatmul.mubr.bf16.gmra.mxu0 %v37
  %v171 = vpop.f32.mrf.mxu0
  %v172 = vadd.f32 0.0, %v171
  %v173 = vpop.f32.mrf.mxu0
  %v174 = vpop.f32.mrf.mxu0
  %v175 = vadd.f32 0.0, %v174
  %v176 = vpop.f32.mrf.mxu0
  %177 = vmatprep.mubr.bf16.mxu0 0
  %178 = vmatmul.mubr.bf16.gmra.mxu0 %v38
  %v179 = vpop.f32.mrf.mxu0
  %v180 = vadd.f32 0.0, %v179
  %v181 = vpop.f32.mrf.mxu0
  %v182 = vpop.f32.mrf.mxu0
  %v183 = vadd.f32 0.0, %v182
  %v184 = vpop.f32.mrf.mxu0
  %185 = vmatprep.mubr.bf16.mxu0 0
  %186 = vmatmul.mubr.bf16.gmra.mxu0 %v39
  %v187 = vpop.f32.mrf.mxu0
  %v188 = vadd.f32 0.0, %v187
  %v189 = vpop.f32.mrf.mxu0
  %v190 = vpop.f32.mrf.mxu0
  %v191 = vadd.f32 0.0, %v190
  %v192 = vpop.f32.mrf.mxu0
  %193 = vmatprep.mubr.bf16.mxu0 0
  %194 = vmatmul.mubr.bf16.gmra.mxu0 %v40
  %v195 = vpop.f32.mrf.mxu0
  %v196 = vadd.f32 0.0, %v195
  %v197 = vpop.f32.mrf.mxu0
  %v198 = vpop.f32.mrf.mxu0
  %v199 = vadd.f32 0.0, %v198
  %v200 = vpop.f32.mrf.mxu0
  %201 = vdwg.mxu0
  %202 = vst [vmem:[%s3] sm:$0xff] %v140
  %203 = vst [vmem:[%s3 + $0x8] sm:$0xff] %v143
  %204 = vst [vmem:[%s3 + $0x10] sm:$0xff] %v148
  %205 = vst [vmem:[%s3 + $0x18] sm:$0xff] %v151
  %206 = vst [vmem:[%s3 + $0x20] sm:$0xff] %v156
  %207 = vst [vmem:[%s3 + $0x28] sm:$0xff] %v159
  %208 = vst [vmem:[%s3 + $0x30] sm:$0xff] %v164
  %209 = vst [vmem:[%s3 + $0x38] sm:$0xff] %v167
  %210 = vst [vmem:[%s3 + $0x40] sm:$0xff] %v172
  %211 = vst [vmem:[%s3 + $0x48] sm:$0xff] %v175
  %212 = vst [vmem:[%s3 + $0x50] sm:$0xff] %v180
  %213 = vst [vmem:[%s3 + $0x58] sm:$0xff] %v183
  %214 = vst [vmem:[%s3 + $0x60] sm:$0xff] %v188
  %215 = vst [vmem:[%s3 + $0x68] sm:$0xff] %v191
  %216 = vst [vmem:[%s3 + $0x70] sm:$0xff] %v196
  %217 = vst [vmem:[%s3 + $0x78] sm:$0xff] %v199
  %v218 = vld [vmem:[%s2] sm:$0xf]
  %v219 = vld [vmem:[%s2 + $0x4] sm:$0xf]
  %v220 = vld [vmem:[%s2 + $0x8] sm:$0xf]
  %v221 = vld [vmem:[%s2 + $0xc] sm:$0xf]
  %v222 = vld [vmem:[%s2 + $0x10] sm:$0xf]
  %v223 = vld [vmem:[%s2 + $0x14] sm:$0xf]
  %v224 = vld [vmem:[%s2 + $0x18] sm:$0xf]
  %v225 = vld [vmem:[%s2 + $0x1c] sm:$0xf]
  %v226 = vld [vmem:[%s2 + $0x20] sm:$0xf]
  %v227 = vld [vmem:[%s2 + $0x24] sm:$0xf]
  %v228 = vld [vmem:[%s2 + $0x28] sm:$0xf]
  %v229 = vld [vmem:[%s2 + $0x2c] sm:$0xf]
  %v230 = vld [vmem:[%s2 + $0x30] sm:$0xf]
  %v231 = vld [vmem:[%s2 + $0x34] sm:$0xf]
  %v232 = vld [vmem:[%s2 + $0x38] sm:$0xf]
  %v233 = vld [vmem:[%s2 + $0x3c] sm:$0xf]
  %v250 = vunpack.c.l.b16 %v218
  %v251 = vunpack.c.l.b16 %v219
  %v252 = vunpack.c.l.b16 %v220
  %v253 = vunpack.c.l.b16 %v221
  %v254 = vunpack.c.l.b16 %v222
  %v255 = vunpack.c.l.b16 %v223
  %v256 = vunpack.c.l.b16 %v224
  %v257 = vunpack.c.l.b16 %v225
  %v258 = vunpack.c.l.b16 %v226
  %v259 = vunpack.c.l.b16 %v227
  %v260 = vunpack.c.l.b16 %v228
  %v261 = vunpack.c.l.b16 %v229
  %v262 = vunpack.c.l.b16 %v230
  %v263 = vunpack.c.l.b16 %v231
  %v264 = vunpack.c.l.b16 %v232
  %v265 = vunpack.c.l.b16 %v233
  %v266 = vpack.c.b16 %v251, %v250
  %v267 = vpack.c.b16 %v253, %v252
  %v268 = vpack.c.b16 %v255, %v254
  %v269 = vpack.c.b16 %v257, %v256
  %v270 = vpack.c.b16 %v259, %v258
  %v271 = vpack.c.b16 %v261, %v260
  %v272 = vpack.c.b16 %v263, %v262
  %v273 = vpack.c.b16 %v265, %v264
  %282 = vmatprep.subr.bf16.mxu0 0
  %283 = vmatpush1.bf16.msra.mxu0 %v273
  %284 = vmatprep.subr.bf16.mxu0 0
  %285 = vmatpush1.bf16.msra.mxu0 %v272
  %286 = vmatprep.subr.bf16.mxu0 0
  %287 = vmatpush1.bf16.msra.mxu0 %v271
  %288 = vmatprep.subr.bf16.mxu0 0
  %289 = vmatpush1.bf16.msra.mxu0 %v270
  %290 = vmatprep.subr.bf16.mxu0 0
  %291 = vmatpush1.bf16.msra.mxu0 %v269
  %292 = vmatprep.subr.bf16.mxu0 0
  %293 = vmatpush1.bf16.msra.mxu0 %v268
  %294 = vmatprep.subr.bf16.mxu0 0
  %295 = vmatpush1.bf16.msra.mxu0 %v267
  %296 = vmatprep.subr.bf16.mxu0 0
  %297 = vmatpush1.bf16.msra.mxu0 %v266
  %298 = vmatprep.subr.bf16.mxu0 0
  %299 = vmatpush2.bf16.msra.mxu0 0
  %300 = vmatprep.subr.bf16.mxu0 0
  %301 = vmatpush2.bf16.msra.mxu0 0
  %302 = vmatprep.subr.bf16.mxu0 0
  %303 = vmatpush2.bf16.msra.mxu0 0
  %304 = vmatprep.subr.bf16.mxu0 0
  %305 = vmatpush2.bf16.msra.mxu0 0
  %306 = vmatprep.subr.bf16.mxu0 0
  %307 = vmatpush2.bf16.msra.mxu0 0
  %308 = vmatprep.subr.bf16.mxu0 0
  %309 = vmatpush2.bf16.msra.mxu0 0
  %310 = vmatprep.subr.bf16.mxu0 0
  %311 = vmatpush2.bf16.msra.mxu0 0
  %312 = vmatprep.subr.bf16.mxu0 0
  %313 = vmatpush2.bf16.msra.mxu0 0
  %314 = vmatprep.mubr.bf16.mxu0 0
  %315 = vmatmul.mubr.bf16.gmra.mxu0 %v33
  %v316 = vpop.f32.mrf.mxu0
  %v317 = vadd.f32 0.0, %v316
  %v318 = vpop.f32.mrf.mxu0
  %v319 = vpop.f32.mrf.mxu0
  %v320 = vadd.f32 0.0, %v319
  %v321 = vpop.f32.mrf.mxu0
  %322 = vmatprep.mubr.bf16.mxu0 0
  %323 = vmatmul.mubr.bf16.gmra.mxu0 %v34
  %v324 = vpop.f32.mrf.mxu0
  %v325 = vadd.f32 0.0, %v324
  %v326 = vpop.f32.mrf.mxu0
  %v327 = vpop.f32.mrf.mxu0
  %v328 = vadd.f32 0.0, %v327
  %v329 = vpop.f32.mrf.mxu0
  %330 = vmatprep.mubr.bf16.mxu0 0
  %331 = vmatmul.mubr.bf16.gmra.mxu0 %v35
  %v332 = vpop.f32.mrf.mxu0
  %v333 = vadd.f32 0.0, %v332
  %v334 = vpop.f32.mrf.mxu0
  %v335 = vpop.f32.mrf.mxu0
  %v336 = vadd.f32 0.0, %v335
  %v337 = vpop.f32.mrf.mxu0
  %338 = vmatprep.mubr.bf16.mxu0 0
  %339 = vmatmul.mubr.bf16.gmra.mxu0 %v36
  %v340 = vpop.f32.mrf.mxu0
  %v341 = vadd.f32 0.0, %v340
  %v342 = vpop.f32.mrf.mxu0
  %v343 = vpop.f32.mrf.mxu0
  %v344 = vadd.f32 0.0, %v343
  %v345 = vpop.f32.mrf.mxu0
  %346 = vmatprep.mubr.bf16.mxu0 0
  %347 = vmatmul.mubr.bf16.gmra.mxu0 %v37
  %v348 = vpop.f32.mrf.mxu0
  %v349 = vadd.f32 0.0, %v348
  %v350 = vpop.f32.mrf.mxu0
  %v351 = vpop.f32.mrf.mxu0
  %v352 = vadd.f32 0.0, %v351
  %v353 = vpop.f32.mrf.mxu0
  %354 = vmatprep.mubr.bf16.mxu0 0
  %355 = vmatmul.mubr.bf16.gmra.mxu0 %v38
  %v356 = vpop.f32.mrf.mxu0
  %v357 = vadd.f32 0.0, %v356
  %v358 = vpop.f32.mrf.mxu0
  %v359 = vpop.f32.mrf.mxu0
  %v360 = vadd.f32 0.0, %v359
  %v361 = vpop.f32.mrf.mxu0
  %362 = vmatprep.mubr.bf16.mxu0 0
  %363 = vmatmul.mubr.bf16.gmra.mxu0 %v39
  %v364 = vpop.f32.mrf.mxu0
  %v365 = vadd.f32 0.0, %v364
  %v366 = vpop.f32.mrf.mxu0
  %v367 = vpop.f32.mrf.mxu0
  %v368 = vadd.f32 0.0, %v367
  %v369 = vpop.f32.mrf.mxu0
  %370 = vmatprep.mubr.bf16.mxu0 0
  %371 = vmatmul.mubr.bf16.gmra.mxu0 %v40
  %v372 = vpop.f32.mrf.mxu0
  %v373 = vadd.f32 0.0, %v372
  %v374 = vpop.f32.mrf.mxu0
  %v375 = vpop.f32.mrf.mxu0
  %v376 = vadd.f32 0.0, %v375
  %v377 = vpop.f32.mrf.mxu0
  %378 = vdwg.mxu0
  %379 = vst [vmem:[%s4] sm:$0xff] %v317
  %380 = vst [vmem:[%s4 + $0x8] sm:$0xff] %v320
  %381 = vst [vmem:[%s4 + $0x10] sm:$0xff] %v325
  %382 = vst [vmem:[%s4 + $0x18] sm:$0xff] %v328
  %383 = vst [vmem:[%s4 + $0x20] sm:$0xff] %v333
  %384 = vst [vmem:[%s4 + $0x28] sm:$0xff] %v336
  %385 = vst [vmem:[%s4 + $0x30] sm:$0xff] %v341
  %386 = vst [vmem:[%s4 + $0x38] sm:$0xff] %v344
  %387 = vst [vmem:[%s4 + $0x40] sm:$0xff] %v349
  %388 = vst [vmem:[%s4 + $0x48] sm:$0xff] %v352
  %389 = vst [vmem:[%s4 + $0x50] sm:$0xff] %v357
  %390 = vst [vmem:[%s4 + $0x58] sm:$0xff] %v360
  %391 = vst [vmem:[%s4 + $0x60] sm:$0xff] %v365
  %392 = vst [vmem:[%s4 + $0x68] sm:$0xff] %v368
  %393 = vst [vmem:[%s4 + $0x70] sm:$0xff] %v373
  %394 = vst [vmem:[%s4 + $0x78] sm:$0xff] %v376
  // Predicated region
  $region14: #{gcn_net_forward.8} parent=0 // pred_check
    _
  $region15: #{gcn_net_forward.8} parent=0 // pred_check_branch
    %396 = sbr.rel (0) target = $region17
  $region16: #{gcn_net_forward.8} parent=0 // pred_region
    _
  $region17: #{gcn_net_forward.8} parent=0 // pred_fallthru
    _
  // Predicated region
  $region18: #{gcn_net_forward.8} parent=0 // pred_check
    _
  $region19: #{gcn_net_forward.8} parent=0 // pred_check_branch
    %398 = sbr.rel (0) target = $region21
  $region20: #{gcn_net_forward.8} parent=0 // pred_region
    _
  $region21: #{gcn_net_forward.8} parent=0 // pred_fallthru
    _
  // Predicated region
  $region22: #{gcn_net_forward.8} parent=0 // pred_check
    _
  $region23: #{gcn_net_forward.8} parent=0 // pred_check_branch
    %400 = sbr.rel (0) target = $region25
  $region24: #{gcn_net_forward.8} parent=0 // pred_region
    _
  $region25: #{gcn_net_forward.8} parent=0 // pred_fallthru
    _
  // Predicated region
  $region26: #{gcn_net_forward.8} parent=0 // pred_check
    _
  $region27: #{gcn_net_forward.8} parent=0 // pred_check_branch
    %402 = sbr.rel (0) target = $region29
  $region28: #{gcn_net_forward.8} parent=0 // pred_region
    _
  $region29: #{gcn_net_forward.8} parent=0 // pred_fallthru
    _

// kernel: gcn_net_forward.6
$region0: #{gcn_net_forward.6}
  #allocation0 [shape = 'u32[]', space=smem, size = 0x4, offset = 0x4, fixed_abs, tag = 'smem constant byte address 0x4 - core index']
  #allocation1 [shape = 'u32[144,128]{1,0:T(1,128)}', space=vmem, size = 0x12000, scoped, tag = 'internal scratch']
  #allocation2 [shape = 'f32[128,128]{1,0:T(8,128)}', space=vmem, size = 0x10000, scoped, tag = 'scratch operand']
  %s0 = inlined_call_operand.vmem [shape: bf16[128,128], index: 0, kind: input, shape index: {}]
  %s1 = inlined_call_operand.vmem [shape: f32[128,128], index: 1, kind: input, shape index: {}, may-alias: {1,2}]
  %s2 = inlined_call_operand.vmem [shape: f32[128,128], index: 2, kind: input, shape index: {}, may-alias: {1,2}]
  %s3 = inlined_call_operand.vmem [shape: bf16[128,128], index: 3, kind: input, shape index: {}]
  %s4 = inlined_call_operand.vmem [shape: f32[1,128], index: 4, kind: input, shape index: {}]
  %s5 = inlined_call_operand.vmem [shape: f32[128,1], index: 5, kind: input, shape index: {}]
  %s6 = inlined_call_operand.vmem [shape: f32[1,128], index: 6, kind: input, shape index: {}]
  %s7 = inlined_call_operand.vmem [shape: f32[1,128], index: 7, kind: input, shape index: {}]
  %s8 = inlined_call_operand.vmem [shape: f32[128,128], index: 8, kind: output, shape index: {}]
  %s9 = sld [smem:[#allocation0]]
  $region50: #{gcn_net_forward.6} parent=0
    _
  %s11 = ssub.s32 1, %s9
  %s12 = scalar_select 0, %s11, %s9
  // Predicated region
  $region2: #{gcn_net_forward.6} parent=0 // pred_check
    _
  $region3: #{gcn_net_forward.6} parent=0 // pred_check_branch
    %14 = sbr.rel (0) target = $region5
  $region4: #{gcn_net_forward.6} parent=0 // pred_region
    _
  $region5: #{gcn_net_forward.6} parent=0 // pred_fallthru
    _
  // Predicated region
  $region6: #{gcn_net_forward.6} parent=0 // pred_check
    _
  $region7: #{gcn_net_forward.6} parent=0 // pred_check_branch
    %16 = sbr.rel (0) target = $region9
  $region8: #{gcn_net_forward.6} parent=0 // pred_region
    _
  $region9: #{gcn_net_forward.6} parent=0 // pred_fallthru
    _
  // Predicated region
  $region10: #{gcn_net_forward.6} parent=0 // pred_check
    _
  $region11: #{gcn_net_forward.6} parent=0 // pred_check_branch
    %18 = sbr.rel (0) target = $region13
  $region12: #{gcn_net_forward.6} parent=0 // pred_region
    _
  $region13: #{gcn_net_forward.6} parent=0 // pred_fallthru
    _
  // Predicated region
  $region14: #{gcn_net_forward.6} parent=0 // pred_check
    _
  $region15: #{gcn_net_forward.6} parent=0 // pred_check_branch
    %20 = sbr.rel (0) target = $region17
  $region16: #{gcn_net_forward.6} parent=0 // pred_region
    _
  $region17: #{gcn_net_forward.6} parent=0 // pred_fallthru
    _
  // Predicated region
  $region18: #{gcn_net_forward.6} parent=0 // pred_check
    _
  $region19: #{gcn_net_forward.6} parent=0 // pred_check_branch
    %22 = sbr.rel (0) target = $region21
  $region20: #{gcn_net_forward.6} parent=0 // pred_region
    _
  $region21: #{gcn_net_forward.6} parent=0 // pred_fallthru
    _
  // Predicated region
  $region22: #{gcn_net_forward.6} parent=0 // pred_check
    _
  $region23: #{gcn_net_forward.6} parent=0 // pred_check_branch
    %24 = sbr.rel (0) target = $region25
  $region24: #{gcn_net_forward.6} parent=0 // pred_region
    _
  $region25: #{gcn_net_forward.6} parent=0 // pred_fallthru
    _
  // Predicated region
  $region26: #{gcn_net_forward.6} parent=0 // pred_check
    _
  $region27: #{gcn_net_forward.6} parent=0 // pred_check_branch
    %26 = sbr.rel (0) target = $region29
  $region28: #{gcn_net_forward.6} parent=0 // pred_region
    _
  $region29: #{gcn_net_forward.6} parent=0 // pred_fallthru
    _
  // Predicated region
  $region30: #{gcn_net_forward.6} parent=0 // pred_check
    _
  $region31: #{gcn_net_forward.6} parent=0 // pred_check_branch
    %28 = sbr.rel (0) target = $region33
  $region32: #{gcn_net_forward.6} parent=0 // pred_region
    _
  $region33: #{gcn_net_forward.6} parent=0 // pred_fallthru
    _
  %p30 = scmp.eq.s32.totalorder 0, 0
  // Predicated region
  $region34: #{gcn_net_forward.6} parent=0 // pred_check
    %p31 = pneg %p30
  $region35: #{gcn_net_forward.6} parent=0 // pred_check_branch
    %33 = sbr.rel (%p31) target = $region37
  $region36: #{gcn_net_forward.6} parent=0 // pred_region
    %34 = vst [vmem:[#allocation2] sm:$0xff] 0.0
    %35 = vst [vmem:[#allocation2 + $0x8] sm:$0xff] 0.0
    %36 = vst [vmem:[#allocation2 + $0x10] sm:$0xff] 0.0
    %37 = vst [vmem:[#allocation2 + $0x18] sm:$0xff] 0.0
    %38 = vst [vmem:[#allocation2 + $0x20] sm:$0xff] 0.0
    %39 = vst [vmem:[#allocation2 + $0x28] sm:$0xff] 0.0
    %40 = vst [vmem:[#allocation2 + $0x30] sm:$0xff] 0.0
    %41 = vst [vmem:[#allocation2 + $0x38] sm:$0xff] 0.0
    %42 = vst [vmem:[#allocation2 + $0x40] sm:$0xff] 0.0
    %43 = vst [vmem:[#allocation2 + $0x48] sm:$0xff] 0.0
    %44 = vst [vmem:[#allocation2 + $0x50] sm:$0xff] 0.0
    %45 = vst [vmem:[#allocation2 + $0x58] sm:$0xff] 0.0
    %46 = vst [vmem:[#allocation2 + $0x60] sm:$0xff] 0.0
    %47 = vst [vmem:[#allocation2 + $0x68] sm:$0xff] 0.0
    %48 = vst [vmem:[#allocation2 + $0x70] sm:$0xff] 0.0
    %49 = vst [vmem:[#allocation2 + $0x78] sm:$0xff] 0.0
  $region37: #{gcn_net_forward.6} parent=0 // pred_fallthru
    _
  %v50 = vld [vmem:[#allocation2] sm:$0xff]
  %v51 = vld [vmem:[#allocation2 + $0x8] sm:$0xff]
  %v52 = vld [vmem:[#allocation2 + $0x10] sm:$0xff]
  %v53 = vld [vmem:[#allocation2 + $0x18] sm:$0xff]
  %v54 = vld [vmem:[#allocation2 + $0x20] sm:$0xff]
  %v55 = vld [vmem:[#allocation2 + $0x28] sm:$0xff]
  %v56 = vld [vmem:[#allocation2 + $0x30] sm:$0xff]
  %v57 = vld [vmem:[#allocation2 + $0x38] sm:$0xff]
  %v58 = vld [vmem:[#allocation2 + $0x40] sm:$0xff]
  %v59 = vld [vmem:[#allocation2 + $0x48] sm:$0xff]
  %v60 = vld [vmem:[#allocation2 + $0x50] sm:$0xff]
  %v61 = vld [vmem:[#allocation2 + $0x58] sm:$0xff]
  %v62 = vld [vmem:[#allocation2 + $0x60] sm:$0xff]
  %v63 = vld [vmem:[#allocation2 + $0x68] sm:$0xff]
  %v64 = vld [vmem:[#allocation2 + $0x70] sm:$0xff]
  %v65 = vld [vmem:[#allocation2 + $0x78] sm:$0xff]
  %v66 = vld [vmem:[%s0] sm:$0xf]
  %v67 = vld [vmem:[%s0 + $0x4] sm:$0xf]
  %v68 = vld [vmem:[%s0 + $0x8] sm:$0xf]
  %v69 = vld [vmem:[%s0 + $0xc] sm:$0xf]
  %v70 = vld [vmem:[%s0 + $0x10] sm:$0xf]
  %v71 = vld [vmem:[%s0 + $0x14] sm:$0xf]
  %v72 = vld [vmem:[%s0 + $0x18] sm:$0xf]
  %v73 = vld [vmem:[%s0 + $0x1c] sm:$0xf]
  %v74 = vld [vmem:[%s0 + $0x20] sm:$0xf]
  %v75 = vld [vmem:[%s0 + $0x24] sm:$0xf]
  %v76 = vld [vmem:[%s0 + $0x28] sm:$0xf]
  %v77 = vld [vmem:[%s0 + $0x2c] sm:$0xf]
  %v78 = vld [vmem:[%s0 + $0x30] sm:$0xf]
  %v79 = vld [vmem:[%s0 + $0x34] sm:$0xf]
  %v80 = vld [vmem:[%s0 + $0x38] sm:$0xf]
  %v81 = vld [vmem:[%s0 + $0x3c] sm:$0xf]
  %v82 = vld [vmem:[%s1] sm:$0xff]
  %v83 = vld [vmem:[%s1 + $0x8] sm:$0xff]
  %v84 = vld [vmem:[%s1 + $0x10] sm:$0xff]
  %v85 = vld [vmem:[%s1 + $0x18] sm:$0xff]
  %v86 = vld [vmem:[%s1 + $0x20] sm:$0xff]
  %v87 = vld [vmem:[%s1 + $0x28] sm:$0xff]
  %v88 = vld [vmem:[%s1 + $0x30] sm:$0xff]
  %v89 = vld [vmem:[%s1 + $0x38] sm:$0xff]
  %v90 = vld [vmem:[%s1 + $0x40] sm:$0xff]
  %v91 = vld [vmem:[%s1 + $0x48] sm:$0xff]
  %v92 = vld [vmem:[%s1 + $0x50] sm:$0xff]
  %v93 = vld [vmem:[%s1 + $0x58] sm:$0xff]
  %v94 = vld [vmem:[%s1 + $0x60] sm:$0xff]
  %v95 = vld [vmem:[%s1 + $0x68] sm:$0xff]
  %v96 = vld [vmem:[%s1 + $0x70] sm:$0xff]
  %v97 = vld [vmem:[%s1 + $0x78] sm:$0xff]
  %v98 = vpack.c.bf16 %v83, %v82
  %v99 = vpack.c.bf16 %v85, %v84
  %v100 = vpack.c.bf16 %v87, %v86
  %v101 = vpack.c.bf16 %v89, %v88
  %v102 = vpack.c.bf16 %v91, %v90
  %v103 = vpack.c.bf16 %v93, %v92
  %v104 = vpack.c.bf16 %v95, %v94
  %v105 = vpack.c.bf16 %v97, %v96
  %v122 = vunpack.c.l.b16 %v66
  %v123 = vunpack.c.l.b16 %v67
  %v124 = vunpack.c.l.b16 %v68
  %v125 = vunpack.c.l.b16 %v69
  %v126 = vunpack.c.l.b16 %v70
  %v127 = vunpack.c.l.b16 %v71
  %v128 = vunpack.c.l.b16 %v72
  %v129 = vunpack.c.l.b16 %v73
  %v130 = vunpack.c.l.b16 %v74
  %v131 = vunpack.c.l.b16 %v75
  %v132 = vunpack.c.l.b16 %v76
  %v133 = vunpack.c.l.b16 %v77
  %v134 = vunpack.c.l.b16 %v78
  %v135 = vunpack.c.l.b16 %v79
  %v136 = vunpack.c.l.b16 %v80
  %v137 = vunpack.c.l.b16 %v81
  %v138 = vpack.c.b16 %v123, %v122
  %v139 = vpack.c.b16 %v125, %v124
  %v140 = vpack.c.b16 %v127, %v126
  %v141 = vpack.c.b16 %v129, %v128
  %v142 = vpack.c.b16 %v131, %v130
  %v143 = vpack.c.b16 %v133, %v132
  %v144 = vpack.c.b16 %v135, %v134
  %v145 = vpack.c.b16 %v137, %v136
  %154 = vmatprep.subr.bf16.mxu0 0
  %155 = vmatpush1.bf16.msra.mxu0 %v105
  %156 = vmatprep.subr.bf16.mxu0 0
  %157 = vmatpush1.bf16.msra.mxu0 %v104
  %158 = vmatprep.subr.bf16.mxu0 0
  %159 = vmatpush1.bf16.msra.mxu0 %v103
  %160 = vmatprep.subr.bf16.mxu0 0
  %161 = vmatpush1.bf16.msra.mxu0 %v102
  %162 = vmatprep.subr.bf16.mxu0 0
  %163 = vmatpush1.bf16.msra.mxu0 %v101
  %164 = vmatprep.subr.bf16.mxu0 0
  %165 = vmatpush1.bf16.msra.mxu0 %v100
  %166 = vmatprep.subr.bf16.mxu0 0
  %167 = vmatpush1.bf16.msra.mxu0 %v99
  %168 = vmatprep.subr.bf16.mxu0 0
  %169 = vmatpush1.bf16.msra.mxu0 %v98
  %170 = vmatprep.subr.bf16.mxu0 0
  %171 = vmatpush2.bf16.msra.mxu0 0
  %172 = vmatprep.subr.bf16.mxu0 0
  %173 = vmatpush2.bf16.msra.mxu0 0
  %174 = vmatprep.subr.bf16.mxu0 0
  %175 = vmatpush2.bf16.msra.mxu0 0
  %176 = vmatprep.subr.bf16.mxu0 0
  %177 = vmatpush2.bf16.msra.mxu0 0
  %178 = vmatprep.subr.bf16.mxu0 0
  %179 = vmatpush2.bf16.msra.mxu0 0
  %180 = vmatprep.subr.bf16.mxu0 0
  %181 = vmatpush2.bf16.msra.mxu0 0
  %182 = vmatprep.subr.bf16.mxu0 0
  %183 = vmatpush2.bf16.msra.mxu0 0
  %184 = vmatprep.subr.bf16.mxu0 0
  %185 = vmatpush2.bf16.msra.mxu0 0
  %186 = vmatprep.mubr.bf16.mxu0 0
  %187 = vmatmul.mubr.bf16.gmra.mxu0 %v138
  %v188 = vpop.f32.mrf.mxu0
  %v189 = vadd.f32 0.0, %v188
  %v190 = vpop.f32.mrf.mxu0
  %v191 = vpop.f32.mrf.mxu0
  %v192 = vadd.f32 0.0, %v191
  %v193 = vpop.f32.mrf.mxu0
  %194 = vmatprep.mubr.bf16.mxu0 0
  %195 = vmatmul.mubr.bf16.gmra.mxu0 %v139
  %v196 = vpop.f32.mrf.mxu0
  %v197 = vadd.f32 0.0, %v196
  %v198 = vpop.f32.mrf.mxu0
  %v199 = vpop.f32.mrf.mxu0
  %v200 = vadd.f32 0.0, %v199
  %v201 = vpop.f32.mrf.mxu0
  %202 = vmatprep.mubr.bf16.mxu0 0
  %203 = vmatmul.mubr.bf16.gmra.mxu0 %v140
  %v204 = vpop.f32.mrf.mxu0
  %v205 = vadd.f32 0.0, %v204
  %v206 = vpop.f32.mrf.mxu0
  %v207 = vpop.f32.mrf.mxu0
  %v208 = vadd.f32 0.0, %v207
  %v209 = vpop.f32.mrf.mxu0
  %210 = vmatprep.mubr.bf16.mxu0 0
  %211 = vmatmul.mubr.bf16.gmra.mxu0 %v141
  %v212 = vpop.f32.mrf.mxu0
  %v213 = vadd.f32 0.0, %v212
  %v214 = vpop.f32.mrf.mxu0
  %v215 = vpop.f32.mrf.mxu0
  %v216 = vadd.f32 0.0, %v215
  %v217 = vpop.f32.mrf.mxu0
  %218 = vmatprep.mubr.bf16.mxu0 0
  %219 = vmatmul.mubr.bf16.gmra.mxu0 %v142
  %v220 = vpop.f32.mrf.mxu0
  %v221 = vadd.f32 0.0, %v220
  %v222 = vpop.f32.mrf.mxu0
  %v223 = vpop.f32.mrf.mxu0
  %v224 = vadd.f32 0.0, %v223
  %v225 = vpop.f32.mrf.mxu0
  %226 = vmatprep.mubr.bf16.mxu0 0
  %227 = vmatmul.mubr.bf16.gmra.mxu0 %v143
  %v228 = vpop.f32.mrf.mxu0
  %v229 = vadd.f32 0.0, %v228
  %v230 = vpop.f32.mrf.mxu0
  %v231 = vpop.f32.mrf.mxu0
  %v232 = vadd.f32 0.0, %v231
  %v233 = vpop.f32.mrf.mxu0
  %234 = vmatprep.mubr.bf16.mxu0 0
  %235 = vmatmul.mubr.bf16.gmra.mxu0 %v144
  %v236 = vpop.f32.mrf.mxu0
  %v237 = vadd.f32 0.0, %v236
  %v238 = vpop.f32.mrf.mxu0
  %v239 = vpop.f32.mrf.mxu0
  %v240 = vadd.f32 0.0, %v239
  %v241 = vpop.f32.mrf.mxu0
  %242 = vmatprep.mubr.bf16.mxu0 0
  %243 = vmatmul.mubr.bf16.gmra.mxu0 %v145
  %v244 = vpop.f32.mrf.mxu0
  %v245 = vadd.f32 0.0, %v244
  %v246 = vpop.f32.mrf.mxu0
  %v247 = vpop.f32.mrf.mxu0
  %v248 = vadd.f32 0.0, %v247
  %v249 = vpop.f32.mrf.mxu0
  %250 = vdwg.mxu0
  %v251 = vadd.f32 %v50, %v189
  %v252 = vadd.f32 %v51, %v192
  %v253 = vadd.f32 %v52, %v197
  %v254 = vadd.f32 %v53, %v200
  %v255 = vadd.f32 %v54, %v205
  %v256 = vadd.f32 %v55, %v208
  %v257 = vadd.f32 %v56, %v213
  %v258 = vadd.f32 %v57, %v216
  %v259 = vadd.f32 %v58, %v221
  %v260 = vadd.f32 %v59, %v224
  %v261 = vadd.f32 %v60, %v229
  %v262 = vadd.f32 %v61, %v232
  %v263 = vadd.f32 %v62, %v237
  %v264 = vadd.f32 %v63, %v240
  %v265 = vadd.f32 %v64, %v245
  %v266 = vadd.f32 %v65, %v248
  %267 = vst [vmem:[#allocation2] sm:$0xff] %v251
  %268 = vst [vmem:[#allocation2 + $0x8] sm:$0xff] %v252
  %269 = vst [vmem:[#allocation2 + $0x10] sm:$0xff] %v253
  %270 = vst [vmem:[#allocation2 + $0x18] sm:$0xff] %v254
  %271 = vst [vmem:[#allocation2 + $0x20] sm:$0xff] %v255
  %272 = vst [vmem:[#allocation2 + $0x28] sm:$0xff] %v256
  %273 = vst [vmem:[#allocation2 + $0x30] sm:$0xff] %v257
  %274 = vst [vmem:[#allocation2 + $0x38] sm:$0xff] %v258
  %275 = vst [vmem:[#allocation2 + $0x40] sm:$0xff] %v259
  %276 = vst [vmem:[#allocation2 + $0x48] sm:$0xff] %v260
  %277 = vst [vmem:[#allocation2 + $0x50] sm:$0xff] %v261
  %278 = vst [vmem:[#allocation2 + $0x58] sm:$0xff] %v262
  %279 = vst [vmem:[#allocation2 + $0x60] sm:$0xff] %v263
  %280 = vst [vmem:[#allocation2 + $0x68] sm:$0xff] %v264
  %281 = vst [vmem:[#allocation2 + $0x70] sm:$0xff] %v265
  %282 = vst [vmem:[#allocation2 + $0x78] sm:$0xff] %v266
  // Predicated region
  $region38: #{gcn_net_forward.6} parent=0 // pred_check
    %p283 = pneg %p30
  $region39: #{gcn_net_forward.6} parent=0 // pred_check_branch
    %285 = sbr.rel (%p283) target = $region41
  $region40: #{gcn_net_forward.6} parent=0 // pred_region
    %v286 = vld [vmem:[#allocation2] sm:$0xff]
    %v287 = vld [vmem:[#allocation2 + $0x8] sm:$0xff]
    %v288 = vld [vmem:[#allocation2 + $0x10] sm:$0xff]
    %v289 = vld [vmem:[#allocation2 + $0x18] sm:$0xff]
    %v290 = vld [vmem:[#allocation2 + $0x20] sm:$0xff]
    %v291 = vld [vmem:[#allocation2 + $0x28] sm:$0xff]
    %v292 = vld [vmem:[#allocation2 + $0x30] sm:$0xff]
    %v293 = vld [vmem:[#allocation2 + $0x38] sm:$0xff]
    %v294 = vld [vmem:[#allocation2 + $0x40] sm:$0xff]
    %v295 = vld [vmem:[#allocation2 + $0x48] sm:$0xff]
    %v296 = vld [vmem:[#allocation2 + $0x50] sm:$0xff]
    %v297 = vld [vmem:[#allocation2 + $0x58] sm:$0xff]
    %v298 = vld [vmem:[#allocation2 + $0x60] sm:$0xff]
    %v299 = vld [vmem:[#allocation2 + $0x68] sm:$0xff]
    %v300 = vld [vmem:[#allocation2 + $0x70] sm:$0xff]
    %v301 = vld [vmem:[#allocation2 + $0x78] sm:$0xff]
    %v302 = vpack.c.bf16 %v287, %v286
    %v303 = vpack.c.bf16 %v289, %v288
    %v304 = vpack.c.bf16 %v291, %v290
    %v305 = vpack.c.bf16 %v293, %v292
    %v306 = vpack.c.bf16 %v295, %v294
    %v307 = vpack.c.bf16 %v297, %v296
    %v308 = vpack.c.bf16 %v299, %v298
    %v309 = vpack.c.bf16 %v301, %v300
    %v310 = vld [vmem:[%s3] sm:$0xf]
    %v311 = vld [vmem:[%s3 + $0x4] sm:$0xf]
    %v312 = vld [vmem:[%s3 + $0x8] sm:$0xf]
    %v313 = vld [vmem:[%s3 + $0xc] sm:$0xf]
    %v314 = vld [vmem:[%s3 + $0x10] sm:$0xf]
    %v315 = vld [vmem:[%s3 + $0x14] sm:$0xf]
    %v316 = vld [vmem:[%s3 + $0x18] sm:$0xf]
    %v317 = vld [vmem:[%s3 + $0x1c] sm:$0xf]
    %v318 = vld [vmem:[%s3 + $0x20] sm:$0xf]
    %v319 = vld [vmem:[%s3 + $0x24] sm:$0xf]
    %v320 = vld [vmem:[%s3 + $0x28] sm:$0xf]
    %v321 = vld [vmem:[%s3 + $0x2c] sm:$0xf]
    %v322 = vld [vmem:[%s3 + $0x30] sm:$0xf]
    %v323 = vld [vmem:[%s3 + $0x34] sm:$0xf]
    %v324 = vld [vmem:[%s3 + $0x38] sm:$0xf]
    %v325 = vld [vmem:[%s3 + $0x3c] sm:$0xf]
    %v326 = vld [vmem:[%s4] sm:$0x1]
    %v328 = vlaneseq
    %v329 = vshrl.u32 %v328, 7
    %v330 = vsub.s32 0, %v329
    %v331 = vrot.slane %v326, %v330
    %v349 = vunpack.c.l.b16 %v310
    %v350 = vunpack.c.l.b16 %v311
    %v351 = vunpack.c.l.b16 %v312
    %v352 = vunpack.c.l.b16 %v313
    %v353 = vunpack.c.l.b16 %v314
    %v354 = vunpack.c.l.b16 %v315
    %v355 = vunpack.c.l.b16 %v316
    %v356 = vunpack.c.l.b16 %v317
    %v357 = vunpack.c.l.b16 %v318
    %v358 = vunpack.c.l.b16 %v319
    %v359 = vunpack.c.l.b16 %v320
    %v360 = vunpack.c.l.b16 %v321
    %v361 = vunpack.c.l.b16 %v322
    %v362 = vunpack.c.l.b16 %v323
    %v363 = vunpack.c.l.b16 %v324
    %v364 = vunpack.c.l.b16 %v325
    %v365 = vpack.c.b16 %v350, %v349
    %v366 = vpack.c.b16 %v352, %v351
    %v367 = vpack.c.b16 %v354, %v353
    %v368 = vpack.c.b16 %v356, %v355
    %v369 = vpack.c.b16 %v358, %v357
    %v370 = vpack.c.b16 %v360, %v359
    %v371 = vpack.c.b16 %v362, %v361
    %v372 = vpack.c.b16 %v364, %v363
    %381 = vmatprep.subr.bf16.mxu0 0
    %382 = vmatpush1.bf16.msra.mxu0 %v372
    %383 = vmatprep.subr.bf16.mxu0 0
    %384 = vmatpush1.bf16.msra.mxu0 %v371
    %385 = vmatprep.subr.bf16.mxu0 0
    %386 = vmatpush1.bf16.msra.mxu0 %v370
    %387 = vmatprep.subr.bf16.mxu0 0
    %388 = vmatpush1.bf16.msra.mxu0 %v369
    %389 = vmatprep.subr.bf16.mxu0 0
    %390 = vmatpush1.bf16.msra.mxu0 %v368
    %391 = vmatprep.subr.bf16.mxu0 0
    %392 = vmatpush1.bf16.msra.mxu0 %v367
    %393 = vmatprep.subr.bf16.mxu0 0
    %394 = vmatpush1.bf16.msra.mxu0 %v366
    %395 = vmatprep.subr.bf16.mxu0 0
    %396 = vmatpush1.bf16.msra.mxu0 %v365
    %397 = vmatprep.subr.bf16.mxu0 0
    %398 = vmatpush2.bf16.msra.mxu0 0
    %399 = vmatprep.subr.bf16.mxu0 0
    %400 = vmatpush2.bf16.msra.mxu0 0
    %401 = vmatprep.subr.bf16.mxu0 0
    %402 = vmatpush2.bf16.msra.mxu0 0
    %403 = vmatprep.subr.bf16.mxu0 0
    %404 = vmatpush2.bf16.msra.mxu0 0
    %405 = vmatprep.subr.bf16.mxu0 0
    %406 = vmatpush2.bf16.msra.mxu0 0
    %407 = vmatprep.subr.bf16.mxu0 0
    %408 = vmatpush2.bf16.msra.mxu0 0
    %409 = vmatprep.subr.bf16.mxu0 0
    %410 = vmatpush2.bf16.msra.mxu0 0
    %411 = vmatprep.subr.bf16.mxu0 0
    %412 = vmatpush2.bf16.msra.mxu0 0
    %413 = vmatprep.mubr.bf16.mxu0 0
    %414 = vmatmul.mubr.bf16.gmra.mxu0 %v302
    %v415 = vpop.f32.mrf.mxu0
    %v416 = vadd.f32 %v331, %v415
    %v417 = vpop.f32.mrf.mxu0
    %v418 = vpop.f32.mrf.mxu0
    %v419 = vadd.f32 %v331, %v418
    %v420 = vpop.f32.mrf.mxu0
    %421 = vmatprep.mubr.bf16.mxu0 0
    %422 = vmatmul.mubr.bf16.gmra.mxu0 %v303
    %v423 = vpop.f32.mrf.mxu0
    %v424 = vadd.f32 %v331, %v423
    %v425 = vpop.f32.mrf.mxu0
    %v426 = vpop.f32.mrf.mxu0
    %v427 = vadd.f32 %v331, %v426
    %v428 = vpop.f32.mrf.mxu0
    %429 = vmatprep.mubr.bf16.mxu0 0
    %430 = vmatmul.mubr.bf16.gmra.mxu0 %v304
    %v431 = vpop.f32.mrf.mxu0
    %v432 = vadd.f32 %v331, %v431
    %v433 = vpop.f32.mrf.mxu0
    %v434 = vpop.f32.mrf.mxu0
    %v435 = vadd.f32 %v331, %v434
    %v436 = vpop.f32.mrf.mxu0
    %437 = vmatprep.mubr.bf16.mxu0 0
    %438 = vmatmul.mubr.bf16.gmra.mxu0 %v305
    %v439 = vpop.f32.mrf.mxu0
    %v440 = vadd.f32 %v331, %v439
    %v441 = vpop.f32.mrf.mxu0
    %v442 = vpop.f32.mrf.mxu0
    %v443 = vadd.f32 %v331, %v442
    %v444 = vpop.f32.mrf.mxu0
    %445 = vmatprep.mubr.bf16.mxu0 0
    %446 = vmatmul.mubr.bf16.gmra.mxu0 %v306
    %v447 = vpop.f32.mrf.mxu0
    %v448 = vadd.f32 %v331, %v447
    %v449 = vpop.f32.mrf.mxu0
    %v450 = vpop.f32.mrf.mxu0
    %v451 = vadd.f32 %v331, %v450
    %v452 = vpop.f32.mrf.mxu0
    %453 = vmatprep.mubr.bf16.mxu0 0
    %454 = vmatmul.mubr.bf16.gmra.mxu0 %v307
    %v455 = vpop.f32.mrf.mxu0
    %v456 = vadd.f32 %v331, %v455
    %v457 = vpop.f32.mrf.mxu0
    %v458 = vpop.f32.mrf.mxu0
    %v459 = vadd.f32 %v331, %v458
    %v460 = vpop.f32.mrf.mxu0
    %461 = vmatprep.mubr.bf16.mxu0 0
    %462 = vmatmul.mubr.bf16.gmra.mxu0 %v308
    %v463 = vpop.f32.mrf.mxu0
    %v464 = vadd.f32 %v331, %v463
    %v465 = vpop.f32.mrf.mxu0
    %v466 = vpop.f32.mrf.mxu0
    %v467 = vadd.f32 %v331, %v466
    %v468 = vpop.f32.mrf.mxu0
    %469 = vmatprep.mubr.bf16.mxu0 0
    %470 = vmatmul.mubr.bf16.gmra.mxu0 %v309
    %v471 = vpop.f32.mrf.mxu0
    %v472 = vadd.f32 %v331, %v471
    %v473 = vpop.f32.mrf.mxu0
    %v474 = vpop.f32.mrf.mxu0
    %v475 = vadd.f32 %v331, %v474
    %v476 = vpop.f32.mrf.mxu0
    %477 = vdwg.mxu0
    %v478 = vld [vmem:[%s5] sm:$0xff]
    %v479 = vld [vmem:[%s5 + $0x8] sm:$0xff]
    %v480 = vld [vmem:[%s5 + $0x10] sm:$0xff]
    %v481 = vld [vmem:[%s5 + $0x18] sm:$0xff]
    %v482 = vld [vmem:[%s5 + $0x20] sm:$0xff]
    %v483 = vld [vmem:[%s5 + $0x28] sm:$0xff]
    %v484 = vld [vmem:[%s5 + $0x30] sm:$0xff]
    %v485 = vld [vmem:[%s5 + $0x38] sm:$0xff]
    %v486 = vld [vmem:[%s5 + $0x40] sm:$0xff]
    %v487 = vld [vmem:[%s5 + $0x48] sm:$0xff]
    %v488 = vld [vmem:[%s5 + $0x50] sm:$0xff]
    %v489 = vld [vmem:[%s5 + $0x58] sm:$0xff]
    %v490 = vld [vmem:[%s5 + $0x60] sm:$0xff]
    %v491 = vld [vmem:[%s5 + $0x68] sm:$0xff]
    %v492 = vld [vmem:[%s5 + $0x70] sm:$0xff]
    %v493 = vld [vmem:[%s5 + $0x78] sm:$0xff]
    %495 = vset.pattern.permute.xlu0 0
    %496 = vperm.xlu0 %495, %v478
    %v497 = vpop.permute.xlu0 %496
    %500 = vset.pattern.permute.xlu0 0
    %501 = vperm.xlu0 %500, %v479
    %v502 = vpop.permute.xlu0 %501
    %505 = vset.pattern.permute.xlu0 0
    %506 = vperm.xlu0 %505, %v480
    %v507 = vpop.permute.xlu0 %506
    %510 = vset.pattern.permute.xlu0 0
    %511 = vperm.xlu0 %510, %v481
    %v512 = vpop.permute.xlu0 %511
    %515 = vset.pattern.permute.xlu0 0
    %516 = vperm.xlu0 %515, %v482
    %v517 = vpop.permute.xlu0 %516
    %520 = vset.pattern.permute.xlu0 0
    %521 = vperm.xlu0 %520, %v483
    %v522 = vpop.permute.xlu0 %521
    %525 = vset.pattern.permute.xlu0 0
    %526 = vperm.xlu0 %525, %v484
    %v527 = vpop.permute.xlu0 %526
    %530 = vset.pattern.permute.xlu0 0
    %531 = vperm.xlu0 %530, %v485
    %v532 = vpop.permute.xlu0 %531
    %535 = vset.pattern.permute.xlu0 0
    %536 = vperm.xlu0 %535, %v486
    %v537 = vpop.permute.xlu0 %536
    %540 = vset.pattern.permute.xlu0 0
    %541 = vperm.xlu0 %540, %v487
    %v542 = vpop.permute.xlu0 %541
    %545 = vset.pattern.permute.xlu0 0
    %546 = vperm.xlu0 %545, %v488
    %v547 = vpop.permute.xlu0 %546
    %550 = vset.pattern.permute.xlu0 0
    %551 = vperm.xlu0 %550, %v489
    %v552 = vpop.permute.xlu0 %551
    %555 = vset.pattern.permute.xlu0 0
    %556 = vperm.xlu0 %555, %v490
    %v557 = vpop.permute.xlu0 %556
    %560 = vset.pattern.permute.xlu0 0
    %561 = vperm.xlu0 %560, %v491
    %v562 = vpop.permute.xlu0 %561
    %565 = vset.pattern.permute.xlu0 0
    %566 = vperm.xlu0 %565, %v492
    %v567 = vpop.permute.xlu0 %566
    %570 = vset.pattern.permute.xlu0 0
    %571 = vperm.xlu0 %570, %v493
    %v572 = vpop.permute.xlu0 %571
    %v574 = vmul.f32 %v416, %v497
    %v575 = vmul.f32 %v419, %v502
    %v576 = vmul.f32 %v424, %v507
    %v577 = vmul.f32 %v427, %v512
    %v578 = vmul.f32 %v432, %v517
    %v579 = vmul.f32 %v435, %v522
    %v580 = vmul.f32 %v440, %v527
    %v581 = vmul.f32 %v443, %v532
    %v582 = vmul.f32 %v448, %v537
    %v583 = vmul.f32 %v451, %v542
    %v584 = vmul.f32 %v456, %v547
    %v585 = vmul.f32 %v459, %v552
    %v586 = vmul.f32 %v464, %v557
    %v587 = vmul.f32 %v467, %v562
    %v588 = vmul.f32 %v472, %v567
    %v589 = vmul.f32 %v475, %v572
    %v590 = vld [vmem:[%s6] sm:$0x1]
    %v592 = vlaneseq
    %v593 = vshrl.u32 %v592, 7
    %v594 = vsub.s32 0, %v593
    %v595 = vrot.slane %v590, %v594
    %v597 = vmul.f32 %v574, %v595
    %v598 = vmul.f32 %v575, %v595
    %v599 = vmul.f32 %v576, %v595
    %v600 = vmul.f32 %v577, %v595
    %v601 = vmul.f32 %v578, %v595
    %v602 = vmul.f32 %v579, %v595
    %v603 = vmul.f32 %v580, %v595
    %v604 = vmul.f32 %v581, %v595
    %v605 = vmul.f32 %v582, %v595
    %v606 = vmul.f32 %v583, %v595
    %v607 = vmul.f32 %v584, %v595
    %v608 = vmul.f32 %v585, %v595
    %v609 = vmul.f32 %v586, %v595
    %v610 = vmul.f32 %v587, %v595
    %v611 = vmul.f32 %v588, %v595
    %v612 = vmul.f32 %v589, %v595
    %v613 = vld [vmem:[%s7] sm:$0x1]
    %v615 = vlaneseq
    %v616 = vshrl.u32 %v615, 7
    %v617 = vsub.s32 0, %v616
    %v618 = vrot.slane %v613, %v617
    %v620 = vadd.f32 %v597, %v618
    %v621 = vadd.f32 %v598, %v618
    %v622 = vadd.f32 %v599, %v618
    %v623 = vadd.f32 %v600, %v618
    %v624 = vadd.f32 %v601, %v618
    %v625 = vadd.f32 %v602, %v618
    %v626 = vadd.f32 %v603, %v618
    %v627 = vadd.f32 %v604, %v618
    %v628 = vadd.f32 %v605, %v618
    %v629 = vadd.f32 %v606, %v618
    %v630 = vadd.f32 %v607, %v618
    %v631 = vadd.f32 %v608, %v618
    %v632 = vadd.f32 %v609, %v618
    %v633 = vadd.f32 %v610, %v618
    %v634 = vadd.f32 %v611, %v618
    %v635 = vadd.f32 %v612, %v618
    %v636 = vmax.f32 %v620, 0.0
    %v637 = vmax.f32 %v621, 0.0
    %v638 = vmax.f32 %v622, 0.0
    %v639 = vmax.f32 %v623, 0.0
    %v640 = vmax.f32 %v624, 0.0
    %v641 = vmax.f32 %v625, 0.0
    %v642 = vmax.f32 %v626, 0.0
    %v643 = vmax.f32 %v627, 0.0
    %v644 = vmax.f32 %v628, 0.0
    %v645 = vmax.f32 %v629, 0.0
    %v646 = vmax.f32 %v630, 0.0
    %v647 = vmax.f32 %v631, 0.0
    %v648 = vmax.f32 %v632, 0.0
    %v649 = vmax.f32 %v633, 0.0
    %v650 = vmax.f32 %v634, 0.0
    %v651 = vmax.f32 %v635, 0.0
    %v652 = vld [vmem:[%s2] sm:$0xff]
    %v653 = vld [vmem:[%s2 + $0x8] sm:$0xff]
    %v654 = vld [vmem:[%s2 + $0x10] sm:$0xff]
    %v655 = vld [vmem:[%s2 + $0x18] sm:$0xff]
    %v656 = vld [vmem:[%s2 + $0x20] sm:$0xff]
    %v657 = vld [vmem:[%s2 + $0x28] sm:$0xff]
    %v658 = vld [vmem:[%s2 + $0x30] sm:$0xff]
    %v659 = vld [vmem:[%s2 + $0x38] sm:$0xff]
    %v660 = vld [vmem:[%s2 + $0x40] sm:$0xff]
    %v661 = vld [vmem:[%s2 + $0x48] sm:$0xff]
    %v662 = vld [vmem:[%s2 + $0x50] sm:$0xff]
    %v663 = vld [vmem:[%s2 + $0x58] sm:$0xff]
    %v664 = vld [vmem:[%s2 + $0x60] sm:$0xff]
    %v665 = vld [vmem:[%s2 + $0x68] sm:$0xff]
    %v666 = vld [vmem:[%s2 + $0x70] sm:$0xff]
    %v667 = vld [vmem:[%s2 + $0x78] sm:$0xff]
    %v668 = vadd.f32 %v652, %v636
    %v669 = vadd.f32 %v653, %v637
    %v670 = vadd.f32 %v654, %v638
    %v671 = vadd.f32 %v655, %v639
    %v672 = vadd.f32 %v656, %v640
    %v673 = vadd.f32 %v657, %v641
    %v674 = vadd.f32 %v658, %v642
    %v675 = vadd.f32 %v659, %v643
    %v676 = vadd.f32 %v660, %v644
    %v677 = vadd.f32 %v661, %v645
    %v678 = vadd.f32 %v662, %v646
    %v679 = vadd.f32 %v663, %v647
    %v680 = vadd.f32 %v664, %v648
    %v681 = vadd.f32 %v665, %v649
    %v682 = vadd.f32 %v666, %v650
    %v683 = vadd.f32 %v667, %v651
    %684 = vst [vmem:[%s8] sm:$0xff] %v668
    %685 = vst [vmem:[%s8 + $0x8] sm:$0xff] %v669
    %686 = vst [vmem:[%s8 + $0x10] sm:$0xff] %v670
    %687 = vst [vmem:[%s8 + $0x18] sm:$0xff] %v671
    %688 = vst [vmem:[%s8 + $0x20] sm:$0xff] %v672
    %689 = vst [vmem:[%s8 + $0x28] sm:$0xff] %v673
    %690 = vst [vmem:[%s8 + $0x30] sm:$0xff] %v674
    %691 = vst [vmem:[%s8 + $0x38] sm:$0xff] %v675
    %692 = vst [vmem:[%s8 + $0x40] sm:$0xff] %v676
    %693 = vst [vmem:[%s8 + $0x48] sm:$0xff] %v677
    %694 = vst [vmem:[%s8 + $0x50] sm:$0xff] %v678
    %695 = vst [vmem:[%s8 + $0x58] sm:$0xff] %v679
    %696 = vst [vmem:[%s8 + $0x60] sm:$0xff] %v680
    %697 = vst [vmem:[%s8 + $0x68] sm:$0xff] %v681
    %698 = vst [vmem:[%s8 + $0x70] sm:$0xff] %v682
    %699 = vst [vmem:[%s8 + $0x78] sm:$0xff] %v683
  $region41: #{gcn_net_forward.6} parent=0 // pred_fallthru
    _
  // Predicated region
  $region42: #{gcn_net_forward.6} parent=0 // pred_check
    _
  $region43: #{gcn_net_forward.6} parent=0 // pred_check_branch
    %701 = sbr.rel (0) target = $region45
  $region44: #{gcn_net_forward.6} parent=0 // pred_region
    _
  $region45: #{gcn_net_forward.6} parent=0 // pred_fallthru
    _
  // Predicated region
  $region46: #{gcn_net_forward.6} parent=0 // pred_check
    _
  $region47: #{gcn_net_forward.6} parent=0 // pred_check_branch
    %703 = sbr.rel (0) target = $region49
  $region48: #{gcn_net_forward.6} parent=0 // pred_region
    _
  $region49: #{gcn_net_forward.6} parent=0 // pred_fallthru
    _

// kernel: gcn_net_forward.9
$region0: #{gcn_net_forward.9}
  #allocation0 [shape = 'u32[]', space=smem, size = 0x4, offset = 0x4, fixed_abs, tag = 'smem constant byte address 0x4 - core index']
  #allocation1 [shape = 'u32[144,128]{1,0:T(1,128)}', space=vmem, size = 0x12000, scoped, tag = 'internal scratch']
  %s0 = inlined_call_operand.vmem [shape: f32[128,128], index: 0, kind: input, shape index: {}]
  %s1 = inlined_call_operand.vmem [shape: f32[1,128], index: 1, kind: input, shape index: {}]
  %s2 = inlined_call_operand.vmem [shape: bf16[128,128], index: 2, kind: input, shape index: {}]
  %s3 = inlined_call_operand.vmem [shape: f32[1,128], index: 3, kind: input, shape index: {}]
  %s4 = inlined_call_operand.vmem [shape: bf16[128,128], index: 4, kind: input, shape index: {}]
  %s5 = inlined_call_operand.vmem [shape: f32[1,128], index: 5, kind: input, shape index: {}]
  %s6 = inlined_call_operand.vmem [shape: f32[128,128], index: 6, kind: output, shape index: {}]
  %s7 = sld [smem:[#allocation0]]
  $region34: #{gcn_net_forward.9} parent=0
    _
  %s9 = ssub.s32 1, %s7
  %s10 = scalar_select 0, %s9, %s7
  // Predicated region
  $region2: #{gcn_net_forward.9} parent=0 // pred_check
    _
  $region3: #{gcn_net_forward.9} parent=0 // pred_check_branch
    %12 = sbr.rel (0) target = $region5
  $region4: #{gcn_net_forward.9} parent=0 // pred_region
    _
  $region5: #{gcn_net_forward.9} parent=0 // pred_fallthru
    _
  // Predicated region
  $region6: #{gcn_net_forward.9} parent=0 // pred_check
    _
  $region7: #{gcn_net_forward.9} parent=0 // pred_check_branch
    %14 = sbr.rel (0) target = $region9
  $region8: #{gcn_net_forward.9} parent=0 // pred_region
    _
  $region9: #{gcn_net_forward.9} parent=0 // pred_fallthru
    _
  // Predicated region
  $region10: #{gcn_net_forward.9} parent=0 // pred_check
    _
  $region11: #{gcn_net_forward.9} parent=0 // pred_check_branch
    %16 = sbr.rel (0) target = $region13
  $region12: #{gcn_net_forward.9} parent=0 // pred_region
    _
  $region13: #{gcn_net_forward.9} parent=0 // pred_fallthru
    _
  // Predicated region
  $region14: #{gcn_net_forward.9} parent=0 // pred_check
    _
  $region15: #{gcn_net_forward.9} parent=0 // pred_check_branch
    %18 = sbr.rel (0) target = $region17
  $region16: #{gcn_net_forward.9} parent=0 // pred_region
    _
  $region17: #{gcn_net_forward.9} parent=0 // pred_fallthru
    _
  // Predicated region
  $region18: #{gcn_net_forward.9} parent=0 // pred_check
    _
  $region19: #{gcn_net_forward.9} parent=0 // pred_check_branch
    %20 = sbr.rel (0) target = $region21
  $region20: #{gcn_net_forward.9} parent=0 // pred_region
    _
  $region21: #{gcn_net_forward.9} parent=0 // pred_fallthru
    _
  // Predicated region
  $region22: #{gcn_net_forward.9} parent=0 // pred_check
    _
  $region23: #{gcn_net_forward.9} parent=0 // pred_check_branch
    %22 = sbr.rel (0) target = $region25
  $region24: #{gcn_net_forward.9} parent=0 // pred_region
    _
  $region25: #{gcn_net_forward.9} parent=0 // pred_fallthru
    _
  %v24 = vld [vmem:[%s0] sm:$0xff]
  %v25 = vld [vmem:[%s0 + $0x8] sm:$0xff]
  %v26 = vld [vmem:[%s0 + $0x10] sm:$0xff]
  %v27 = vld [vmem:[%s0 + $0x18] sm:$0xff]
  %v28 = vld [vmem:[%s0 + $0x20] sm:$0xff]
  %v29 = vld [vmem:[%s0 + $0x28] sm:$0xff]
  %v30 = vld [vmem:[%s0 + $0x30] sm:$0xff]
  %v31 = vld [vmem:[%s0 + $0x38] sm:$0xff]
  %v32 = vld [vmem:[%s0 + $0x40] sm:$0xff]
  %v33 = vld [vmem:[%s0 + $0x48] sm:$0xff]
  %v34 = vld [vmem:[%s0 + $0x50] sm:$0xff]
  %v35 = vld [vmem:[%s0 + $0x58] sm:$0xff]
  %v36 = vld [vmem:[%s0 + $0x60] sm:$0xff]
  %v37 = vld [vmem:[%s0 + $0x68] sm:$0xff]
  %v38 = vld [vmem:[%s0 + $0x70] sm:$0xff]
  %v39 = vld [vmem:[%s0 + $0x78] sm:$0xff]
  %v40 = vld [vmem:[%s1] sm:$0x1]
  %v42 = vlaneseq
  %v43 = vshrl.u32 %v42, 7
  %v44 = vsub.s32 0, %v43
  %v45 = vrot.slane %v40, %v44
  %v47 = vadd.f32 %v24, %v45
  %v48 = vadd.f32 %v25, %v45
  %v49 = vadd.f32 %v26, %v45
  %v50 = vadd.f32 %v27, %v45
  %v51 = vadd.f32 %v28, %v45
  %v52 = vadd.f32 %v29, %v45
  %v53 = vadd.f32 %v30, %v45
  %v54 = vadd.f32 %v31, %v45
  %v55 = vadd.f32 %v32, %v45
  %v56 = vadd.f32 %v33, %v45
  %v57 = vadd.f32 %v34, %v45
  %v58 = vadd.f32 %v35, %v45
  %v59 = vadd.f32 %v36, %v45
  %v60 = vadd.f32 %v37, %v45
  %v61 = vadd.f32 %v38, %v45
  %v62 = vadd.f32 %v39, %v45
  %v63 = vmax.f32 %v47, 0.0
  %v64 = vmax.f32 %v48, 0.0
  %v65 = vmax.f32 %v49, 0.0
  %v66 = vmax.f32 %v50, 0.0
  %v67 = vmax.f32 %v51, 0.0
  %v68 = vmax.f32 %v52, 0.0
  %v69 = vmax.f32 %v53, 0.0
  %v70 = vmax.f32 %v54, 0.0
  %v71 = vmax.f32 %v55, 0.0
  %v72 = vmax.f32 %v56, 0.0
  %v73 = vmax.f32 %v57, 0.0
  %v74 = vmax.f32 %v58, 0.0
  %v75 = vmax.f32 %v59, 0.0
  %v76 = vmax.f32 %v60, 0.0
  %v77 = vmax.f32 %v61, 0.0
  %v78 = vmax.f32 %v62, 0.0
  %v79 = vpack.c.bf16 %v64, %v63
  %v80 = vpack.c.bf16 %v66, %v65
  %v81 = vpack.c.bf16 %v68, %v67
  %v82 = vpack.c.bf16 %v70, %v69
  %v83 = vpack.c.bf16 %v72, %v71
  %v84 = vpack.c.bf16 %v74, %v73
  %v85 = vpack.c.bf16 %v76, %v75
  %v86 = vpack.c.bf16 %v78, %v77
  %v87 = vld [vmem:[%s2] sm:$0xf]
  %v88 = vld [vmem:[%s2 + $0x4] sm:$0xf]
  %v89 = vld [vmem:[%s2 + $0x8] sm:$0xf]
  %v90 = vld [vmem:[%s2 + $0xc] sm:$0xf]
  %v91 = vld [vmem:[%s2 + $0x10] sm:$0xf]
  %v92 = vld [vmem:[%s2 + $0x14] sm:$0xf]
  %v93 = vld [vmem:[%s2 + $0x18] sm:$0xf]
  %v94 = vld [vmem:[%s2 + $0x1c] sm:$0xf]
  %v95 = vld [vmem:[%s2 + $0x20] sm:$0xf]
  %v96 = vld [vmem:[%s2 + $0x24] sm:$0xf]
  %v97 = vld [vmem:[%s2 + $0x28] sm:$0xf]
  %v98 = vld [vmem:[%s2 + $0x2c] sm:$0xf]
  %v99 = vld [vmem:[%s2 + $0x30] sm:$0xf]
  %v100 = vld [vmem:[%s2 + $0x34] sm:$0xf]
  %v101 = vld [vmem:[%s2 + $0x38] sm:$0xf]
  %v102 = vld [vmem:[%s2 + $0x3c] sm:$0xf]
  %v103 = vld [vmem:[%s3] sm:$0x1]
  %v105 = vlaneseq
  %v106 = vshrl.u32 %v105, 7
  %v107 = vsub.s32 0, %v106
  %v108 = vrot.slane %v103, %v107
  %v126 = vunpack.c.l.b16 %v87
  %v127 = vunpack.c.l.b16 %v88
  %v128 = vunpack.c.l.b16 %v89
  %v129 = vunpack.c.l.b16 %v90
  %v130 = vunpack.c.l.b16 %v91
  %v131 = vunpack.c.l.b16 %v92
  %v132 = vunpack.c.l.b16 %v93
  %v133 = vunpack.c.l.b16 %v94
  %v134 = vunpack.c.l.b16 %v95
  %v135 = vunpack.c.l.b16 %v96
  %v136 = vunpack.c.l.b16 %v97
  %v137 = vunpack.c.l.b16 %v98
  %v138 = vunpack.c.l.b16 %v99
  %v139 = vunpack.c.l.b16 %v100
  %v140 = vunpack.c.l.b16 %v101
  %v141 = vunpack.c.l.b16 %v102
  %v142 = vpack.c.b16 %v127, %v126
  %v143 = vpack.c.b16 %v129, %v128
  %v144 = vpack.c.b16 %v131, %v130
  %v145 = vpack.c.b16 %v133, %v132
  %v146 = vpack.c.b16 %v135, %v134
  %v147 = vpack.c.b16 %v137, %v136
  %v148 = vpack.c.b16 %v139, %v138
  %v149 = vpack.c.b16 %v141, %v140
  %158 = vmatprep.subr.bf16.mxu0 0
  %159 = vmatpush1.bf16.msra.mxu0 %v149
  %160 = vmatprep.subr.bf16.mxu0 0
  %161 = vmatpush1.bf16.msra.mxu0 %v148
  %162 = vmatprep.subr.bf16.mxu0 0
  %163 = vmatpush1.bf16.msra.mxu0 %v147
  %164 = vmatprep.subr.bf16.mxu0 0
  %165 = vmatpush1.bf16.msra.mxu0 %v146
  %166 = vmatprep.subr.bf16.mxu0 0
  %167 = vmatpush1.bf16.msra.mxu0 %v145
  %168 = vmatprep.subr.bf16.mxu0 0
  %169 = vmatpush1.bf16.msra.mxu0 %v144
  %170 = vmatprep.subr.bf16.mxu0 0
  %171 = vmatpush1.bf16.msra.mxu0 %v143
  %172 = vmatprep.subr.bf16.mxu0 0
  %173 = vmatpush1.bf16.msra.mxu0 %v142
  %174 = vmatprep.subr.bf16.mxu0 0
  %175 = vmatpush2.bf16.msra.mxu0 0
  %176 = vmatprep.subr.bf16.mxu0 0
  %177 = vmatpush2.bf16.msra.mxu0 0
  %178 = vmatprep.subr.bf16.mxu0 0
  %179 = vmatpush2.bf16.msra.mxu0 0
  %180 = vmatprep.subr.bf16.mxu0 0
  %181 = vmatpush2.bf16.msra.mxu0 0
  %182 = vmatprep.subr.bf16.mxu0 0
  %183 = vmatpush2.bf16.msra.mxu0 0
  %184 = vmatprep.subr.bf16.mxu0 0
  %185 = vmatpush2.bf16.msra.mxu0 0
  %186 = vmatprep.subr.bf16.mxu0 0
  %187 = vmatpush2.bf16.msra.mxu0 0
  %188 = vmatprep.subr.bf16.mxu0 0
  %189 = vmatpush2.bf16.msra.mxu0 0
  %190 = vmatprep.mubr.bf16.mxu0 0
  %191 = vmatmul.mubr.bf16.gmra.mxu0 %v79
  %v192 = vpop.f32.mrf.mxu0
  %v193 = vadd.f32 %v108, %v192
  %v194 = vpop.f32.mrf.mxu0
  %v195 = vpop.f32.mrf.mxu0
  %v196 = vadd.f32 %v108, %v195
  %v197 = vpop.f32.mrf.mxu0
  %198 = vmatprep.mubr.bf16.mxu0 0
  %199 = vmatmul.mubr.bf16.gmra.mxu0 %v80
  %v200 = vpop.f32.mrf.mxu0
  %v201 = vadd.f32 %v108, %v200
  %v202 = vpop.f32.mrf.mxu0
  %v203 = vpop.f32.mrf.mxu0
  %v204 = vadd.f32 %v108, %v203
  %v205 = vpop.f32.mrf.mxu0
  %206 = vmatprep.mubr.bf16.mxu0 0
  %207 = vmatmul.mubr.bf16.gmra.mxu0 %v81
  %v208 = vpop.f32.mrf.mxu0
  %v209 = vadd.f32 %v108, %v208
  %v210 = vpop.f32.mrf.mxu0
  %v211 = vpop.f32.mrf.mxu0
  %v212 = vadd.f32 %v108, %v211
  %v213 = vpop.f32.mrf.mxu0
  %214 = vmatprep.mubr.bf16.mxu0 0
  %215 = vmatmul.mubr.bf16.gmra.mxu0 %v82
  %v216 = vpop.f32.mrf.mxu0
  %v217 = vadd.f32 %v108, %v216
  %v218 = vpop.f32.mrf.mxu0
  %v219 = vpop.f32.mrf.mxu0
  %v220 = vadd.f32 %v108, %v219
  %v221 = vpop.f32.mrf.mxu0
  %222 = vmatprep.mubr.bf16.mxu0 0
  %223 = vmatmul.mubr.bf16.gmra.mxu0 %v83
  %v224 = vpop.f32.mrf.mxu0
  %v225 = vadd.f32 %v108, %v224
  %v226 = vpop.f32.mrf.mxu0
  %v227 = vpop.f32.mrf.mxu0
  %v228 = vadd.f32 %v108, %v227
  %v229 = vpop.f32.mrf.mxu0
  %230 = vmatprep.mubr.bf16.mxu0 0
  %231 = vmatmul.mubr.bf16.gmra.mxu0 %v84
  %v232 = vpop.f32.mrf.mxu0
  %v233 = vadd.f32 %v108, %v232
  %v234 = vpop.f32.mrf.mxu0
  %v235 = vpop.f32.mrf.mxu0
  %v236 = vadd.f32 %v108, %v235
  %v237 = vpop.f32.mrf.mxu0
  %238 = vmatprep.mubr.bf16.mxu0 0
  %239 = vmatmul.mubr.bf16.gmra.mxu0 %v85
  %v240 = vpop.f32.mrf.mxu0
  %v241 = vadd.f32 %v108, %v240
  %v242 = vpop.f32.mrf.mxu0
  %v243 = vpop.f32.mrf.mxu0
  %v244 = vadd.f32 %v108, %v243
  %v245 = vpop.f32.mrf.mxu0
  %246 = vmatprep.mubr.bf16.mxu0 0
  %247 = vmatmul.mubr.bf16.gmra.mxu0 %v86
  %v248 = vpop.f32.mrf.mxu0
  %v249 = vadd.f32 %v108, %v248
  %v250 = vpop.f32.mrf.mxu0
  %v251 = vpop.f32.mrf.mxu0
  %v252 = vadd.f32 %v108, %v251
  %v253 = vpop.f32.mrf.mxu0
  %254 = vdwg.mxu0
  %v255 = vmax.f32 %v193, 0.0
  %v256 = vmax.f32 %v196, 0.0
  %v257 = vmax.f32 %v201, 0.0
  %v258 = vmax.f32 %v204, 0.0
  %v259 = vmax.f32 %v209, 0.0
  %v260 = vmax.f32 %v212, 0.0
  %v261 = vmax.f32 %v217, 0.0
  %v262 = vmax.f32 %v220, 0.0
  %v263 = vmax.f32 %v225, 0.0
  %v264 = vmax.f32 %v228, 0.0
  %v265 = vmax.f32 %v233, 0.0
  %v266 = vmax.f32 %v236, 0.0
  %v267 = vmax.f32 %v241, 0.0
  %v268 = vmax.f32 %v244, 0.0
  %v269 = vmax.f32 %v249, 0.0
  %v270 = vmax.f32 %v252, 0.0
  %v271 = vpack.c.bf16 %v256, %v255
  %v272 = vpack.c.bf16 %v258, %v257
  %v273 = vpack.c.bf16 %v260, %v259
  %v274 = vpack.c.bf16 %v262, %v261
  %v275 = vpack.c.bf16 %v264, %v263
  %v276 = vpack.c.bf16 %v266, %v265
  %v277 = vpack.c.bf16 %v268, %v267
  %v278 = vpack.c.bf16 %v270, %v269
  %v279 = vld [vmem:[%s4] sm:$0xf]
  %v280 = vld [vmem:[%s4 + $0x4] sm:$0xf]
  %v281 = vld [vmem:[%s4 + $0x8] sm:$0xf]
  %v282 = vld [vmem:[%s4 + $0xc] sm:$0xf]
  %v283 = vld [vmem:[%s4 + $0x10] sm:$0xf]
  %v284 = vld [vmem:[%s4 + $0x14] sm:$0xf]
  %v285 = vld [vmem:[%s4 + $0x18] sm:$0xf]
  %v286 = vld [vmem:[%s4 + $0x1c] sm:$0xf]
  %v287 = vld [vmem:[%s4 + $0x20] sm:$0xf]
  %v288 = vld [vmem:[%s4 + $0x24] sm:$0xf]
  %v289 = vld [vmem:[%s4 + $0x28] sm:$0xf]
  %v290 = vld [vmem:[%s4 + $0x2c] sm:$0xf]
  %v291 = vld [vmem:[%s4 + $0x30] sm:$0xf]
  %v292 = vld [vmem:[%s4 + $0x34] sm:$0xf]
  %v293 = vld [vmem:[%s4 + $0x38] sm:$0xf]
  %v294 = vld [vmem:[%s4 + $0x3c] sm:$0xf]
  %v295 = vld [vmem:[%s5] sm:$0x1]
  %v297 = vlaneseq
  %v298 = vshrl.u32 %v297, 7
  %v299 = vsub.s32 0, %v298
  %v300 = vrot.slane %v295, %v299
  %v318 = vunpack.c.l.b16 %v279
  %v319 = vunpack.c.l.b16 %v280
  %v320 = vunpack.c.l.b16 %v281
  %v321 = vunpack.c.l.b16 %v282
  %v322 = vunpack.c.l.b16 %v283
  %v323 = vunpack.c.l.b16 %v284
  %v324 = vunpack.c.l.b16 %v285
  %v325 = vunpack.c.l.b16 %v286
  %v326 = vunpack.c.l.b16 %v287
  %v327 = vunpack.c.l.b16 %v288
  %v328 = vunpack.c.l.b16 %v289
  %v329 = vunpack.c.l.b16 %v290
  %v330 = vunpack.c.l.b16 %v291
  %v331 = vunpack.c.l.b16 %v292
  %v332 = vunpack.c.l.b16 %v293
  %v333 = vunpack.c.l.b16 %v294
  %v334 = vpack.c.b16 %v319, %v318
  %v335 = vpack.c.b16 %v321, %v320
  %v336 = vpack.c.b16 %v323, %v322
  %v337 = vpack.c.b16 %v325, %v324
  %v338 = vpack.c.b16 %v327, %v326
  %v339 = vpack.c.b16 %v329, %v328
  %v340 = vpack.c.b16 %v331, %v330
  %v341 = vpack.c.b16 %v333, %v332
  %350 = vmatprep.subr.bf16.mxu0 0
  %351 = vmatpush1.bf16.msra.mxu0 %v341
  %352 = vmatprep.subr.bf16.mxu0 0
  %353 = vmatpush1.bf16.msra.mxu0 %v340
  %354 = vmatprep.subr.bf16.mxu0 0
  %355 = vmatpush1.bf16.msra.mxu0 %v339
  %356 = vmatprep.subr.bf16.mxu0 0
  %357 = vmatpush1.bf16.msra.mxu0 %v338
  %358 = vmatprep.subr.bf16.mxu0 0
  %359 = vmatpush1.bf16.msra.mxu0 %v337
  %360 = vmatprep.subr.bf16.mxu0 0
  %361 = vmatpush1.bf16.msra.mxu0 %v336
  %362 = vmatprep.subr.bf16.mxu0 0
  %363 = vmatpush1.bf16.msra.mxu0 %v335
  %364 = vmatprep.subr.bf16.mxu0 0
  %365 = vmatpush1.bf16.msra.mxu0 %v334
  %366 = vmatprep.subr.bf16.mxu0 0
  %367 = vmatpush2.bf16.msra.mxu0 0
  %368 = vmatprep.subr.bf16.mxu0 0
  %369 = vmatpush2.bf16.msra.mxu0 0
  %370 = vmatprep.subr.bf16.mxu0 0
  %371 = vmatpush2.bf16.msra.mxu0 0
  %372 = vmatprep.subr.bf16.mxu0 0
  %373 = vmatpush2.bf16.msra.mxu0 0
  %374 = vmatprep.subr.bf16.mxu0 0
  %375 = vmatpush2.bf16.msra.mxu0 0
  %376 = vmatprep.subr.bf16.mxu0 0
  %377 = vmatpush2.bf16.msra.mxu0 0
  %378 = vmatprep.subr.bf16.mxu0 0
  %379 = vmatpush2.bf16.msra.mxu0 0
  %380 = vmatprep.subr.bf16.mxu0 0
  %381 = vmatpush2.bf16.msra.mxu0 0
  %382 = vmatprep.mubr.bf16.mxu0 0
  %383 = vmatmul.mubr.bf16.gmra.mxu0 %v271
  %v384 = vpop.f32.mrf.mxu0
  %v385 = vadd.f32 %v300, %v384
  %v386 = vpop.f32.mrf.mxu0
  %v387 = vpop.f32.mrf.mxu0
  %v388 = vadd.f32 %v300, %v387
  %v389 = vpop.f32.mrf.mxu0
  %390 = vmatprep.mubr.bf16.mxu0 0
  %391 = vmatmul.mubr.bf16.gmra.mxu0 %v272
  %v392 = vpop.f32.mrf.mxu0
  %v393 = vadd.f32 %v300, %v392
  %v394 = vpop.f32.mrf.mxu0
  %v395 = vpop.f32.mrf.mxu0
  %v396 = vadd.f32 %v300, %v395
  %v397 = vpop.f32.mrf.mxu0
  %398 = vmatprep.mubr.bf16.mxu0 0
  %399 = vmatmul.mubr.bf16.gmra.mxu0 %v273
  %v400 = vpop.f32.mrf.mxu0
  %v401 = vadd.f32 %v300, %v400
  %v402 = vpop.f32.mrf.mxu0
  %v403 = vpop.f32.mrf.mxu0
  %v404 = vadd.f32 %v300, %v403
  %v405 = vpop.f32.mrf.mxu0
  %406 = vmatprep.mubr.bf16.mxu0 0
  %407 = vmatmul.mubr.bf16.gmra.mxu0 %v274
  %v408 = vpop.f32.mrf.mxu0
  %v409 = vadd.f32 %v300, %v408
  %v410 = vpop.f32.mrf.mxu0
  %v411 = vpop.f32.mrf.mxu0
  %v412 = vadd.f32 %v300, %v411
  %v413 = vpop.f32.mrf.mxu0
  %414 = vmatprep.mubr.bf16.mxu0 0
  %415 = vmatmul.mubr.bf16.gmra.mxu0 %v275
  %v416 = vpop.f32.mrf.mxu0
  %v417 = vadd.f32 %v300, %v416
  %v418 = vpop.f32.mrf.mxu0
  %v419 = vpop.f32.mrf.mxu0
  %v420 = vadd.f32 %v300, %v419
  %v421 = vpop.f32.mrf.mxu0
  %422 = vmatprep.mubr.bf16.mxu0 0
  %423 = vmatmul.mubr.bf16.gmra.mxu0 %v276
  %v424 = vpop.f32.mrf.mxu0
  %v425 = vadd.f32 %v300, %v424
  %v426 = vpop.f32.mrf.mxu0
  %v427 = vpop.f32.mrf.mxu0
  %v428 = vadd.f32 %v300, %v427
  %v429 = vpop.f32.mrf.mxu0
  %430 = vmatprep.mubr.bf16.mxu0 0
  %431 = vmatmul.mubr.bf16.gmra.mxu0 %v277
  %v432 = vpop.f32.mrf.mxu0
  %v433 = vadd.f32 %v300, %v432
  %v434 = vpop.f32.mrf.mxu0
  %v435 = vpop.f32.mrf.mxu0
  %v436 = vadd.f32 %v300, %v435
  %v437 = vpop.f32.mrf.mxu0
  %438 = vmatprep.mubr.bf16.mxu0 0
  %439 = vmatmul.mubr.bf16.gmra.mxu0 %v278
  %v440 = vpop.f32.mrf.mxu0
  %v441 = vadd.f32 %v300, %v440
  %v442 = vpop.f32.mrf.mxu0
  %v443 = vpop.f32.mrf.mxu0
  %v444 = vadd.f32 %v300, %v443
  %v445 = vpop.f32.mrf.mxu0
  %446 = vdwg.mxu0
  %447 = vst [vmem:[%s6] sm:$0xff] %v385
  %448 = vst [vmem:[%s6 + $0x8] sm:$0xff] %v388
  %449 = vst [vmem:[%s6 + $0x10] sm:$0xff] %v393
  %450 = vst [vmem:[%s6 + $0x18] sm:$0xff] %v396
  %451 = vst [vmem:[%s6 + $0x20] sm:$0xff] %v401
  %452 = vst [vmem:[%s6 + $0x28] sm:$0xff] %v404
  %453 = vst [vmem:[%s6 + $0x30] sm:$0xff] %v409
  %454 = vst [vmem:[%s6 + $0x38] sm:$0xff] %v412
  %455 = vst [vmem:[%s6 + $0x40] sm:$0xff] %v417
  %456 = vst [vmem:[%s6 + $0x48] sm:$0xff] %v420
  %457 = vst [vmem:[%s6 + $0x50] sm:$0xff] %v425
  %458 = vst [vmem:[%s6 + $0x58] sm:$0xff] %v428
  %459 = vst [vmem:[%s6 + $0x60] sm:$0xff] %v433
  %460 = vst [vmem:[%s6 + $0x68] sm:$0xff] %v436
  %461 = vst [vmem:[%s6 + $0x70] sm:$0xff] %v441
  %462 = vst [vmem:[%s6 + $0x78] sm:$0xff] %v444
  // Predicated region
  $region26: #{gcn_net_forward.9} parent=0 // pred_check
    _
  $region27: #{gcn_net_forward.9} parent=0 // pred_check_branch
    %464 = sbr.rel (0) target = $region29
  $region28: #{gcn_net_forward.9} parent=0 // pred_region
    _
  $region29: #{gcn_net_forward.9} parent=0 // pred_fallthru
    _
  // Predicated region
  $region30: #{gcn_net_forward.9} parent=0 // pred_check
    _
  $region31: #{gcn_net_forward.9} parent=0 // pred_check_branch
    %466 = sbr.rel (0) target = $region33
  $region32: #{gcn_net_forward.9} parent=0 // pred_region
    _
  $region33: #{gcn_net_forward.9} parent=0 // pred_fallthru
    _

</llo_original>
